<compile_context>
chip_gen: v6e
topology: v6e:2x2x1
jax: 0.10.0
libtpu: 0.0.40
codegen_flags: <defaults>
</compile_context>

<pallas_src>
import functools

import jax
import jax.numpy as jnp
from jax.experimental import pallas as pl
from jax.experimental.pallas import tpu as pltpu


def _layer_norm(v, g, b, eps=1e-5):
    mu = jnp.mean(v, axis=-1, keepdims=True)
    var = jnp.mean((v - mu) ** 2, axis=-1, keepdims=True)
    return (v - mu) * jax.lax.rsqrt(var + eps) * g + b


def residual_attention_kernel(
    x_ref,                        # (1, L, D) tile of one batch element (fp32)
    w_qkv_ref, b_qkv_ref,         # (D, 3D) bf16 (q-scale folded in), (1, 3D) fp32
    w_out_ref, b_out_ref,         # (D, D)  bf16, (1, D) fp32
    g1_ref, b1_ref,               # (1, D) fp32  ln_1
    g2_ref, b2_ref,               # (1, D) fp32  ln_2
    w_fc_ref, b_fc_ref,           # (D, 4D) bf16, (1, 4D) fp32
    w_proj_ref, b_proj_ref,       # (4D, D) bf16, (1, D) fp32
    o_ref,                        # (1, L, D)
    *, d_model, n_head,
):
    head_dim = d_model // n_head
    seq = x_ref.shape[1]
    cdt = w_qkv_ref.dtype                                      # MXU compute dtype (bf16)

    x = x_ref[0].astype(jnp.float32)                           # (L, D)

    # ----------------- attention branch (LN / softmax in fp32) -----------------
    h = _layer_norm(x, g1_ref[...], b1_ref[...])
    qkv = jnp.dot(h.astype(cdt), w_qkv_ref[...],
                  preferred_element_type=jnp.float32) + b_qkv_ref[...]     # (L, 3D)

    def to_heads(t):                                           # (L, D) -> (H, L, hd)
        return jnp.swapaxes(t.reshape(seq, n_head, head_dim), 0, 1)

    q = to_heads(qkv[:, :d_model]).astype(cdt)                 # scale already folded
    k = to_heads(qkv[:, d_model:2 * d_model]).astype(cdt)
    v = to_heads(qkv[:, 2 * d_model:]).astype(cdt)

    s = jnp.einsum("hqd,hkd->hqk", q, k,
                   preferred_element_type=jnp.float32)         # (H, L, L)
    s = s - jnp.max(s, axis=-1, keepdims=True)
    p = jnp.exp(s)
    p = p * pl.reciprocal(jnp.sum(p, axis=-1, keepdims=True), approx=True)
    o = jnp.einsum("hqk,hkd->hqd", p.astype(cdt), v,
                   preferred_element_type=jnp.float32)         # (H, L, hd)
    attn = jnp.swapaxes(o, 0, 1).reshape(seq, d_model)         # (L, D)
    attn = jnp.dot(attn.astype(cdt), w_out_ref[...],
                   preferred_element_type=jnp.float32) + b_out_ref[...]
    x = x + attn

    # ----------------- MLP branch ----------------------------------------------
    h2 = _layer_norm(x, g2_ref[...], b2_ref[...])
    ff = jnp.dot(h2.astype(cdt), w_fc_ref[...],
                 preferred_element_type=jnp.float32) + b_fc_ref[...]       # (L, 4D)
    ff = ff * jax.nn.sigmoid(1.702 * ff)                       # QuickGELU (fp32, EUP)
    ff = jnp.dot(ff.astype(cdt), w_proj_ref[...],
                 preferred_element_type=jnp.float32) + b_proj_ref[...]
    x = x + ff

    o_ref[0] = x.astype(o_ref.dtype)


def residual_attention_block(x_lnd, params, n_head, compute_dtype=jnp.bfloat16):
    """x_lnd: (L, N, D) in PyTorch nn.MultiheadAttention layout. attn_mask=None path."""
    L, N, D = x_lnd.shape
    head_dim = D // n_head
    scale = 1.0 / (head_dim ** 0.5)

    # ---- one-time wrapper-side weight prep (pre-transpose, fold q-scale, bf16) ----
    qscale = jnp.concatenate([jnp.full((D,), scale, jnp.float32),
                              jnp.ones((2 * D,), jnp.float32)])
    w_qkv = (params["w_qkv"].astype(jnp.float32).T * qscale[None, :]).astype(compute_dtype)  # (D, 3D)
    b_qkv = params["b_qkv"].astype(jnp.float32) * qscale[None, :]                             # (1, 3D)
    w_out = params["w_out"].astype(jnp.float32).T.astype(compute_dtype)                       # (D, D)
    w_fc = params["w_fc"].astype(jnp.float32).T.astype(compute_dtype)                         # (D, 4D)
    w_proj = params["w_proj"].astype(jnp.float32).T.astype(compute_dtype)                     # (4D, D)
    b_out = params["b_out"].astype(jnp.float32)
    b_fc = params["b_fc"].astype(jnp.float32)
    b_proj = params["b_proj"].astype(jnp.float32)
    g1 = params["g1"].astype(jnp.float32)
    b1 = params["b1"].astype(jnp.float32)
    g2 = params["g2"].astype(jnp.float32)
    b2 = params["b2"].astype(jnp.float32)

    # TODO(synk): for very large L, add a query-tile grid axis (flash-style online
    # softmax) and stream the 4D hidden dim of the MLP to bound VMEM on v7x/v5e.
    x = jnp.transpose(x_lnd, (1, 0, 2))                        # (N, L, D)

    # Weights/biases: whole-array VMEM residents (single buffer, DMA'd once, never
    # re-fetched across the batch grid). Activations are pipelined per batch element.
    resident = pl.BlockSpec(memory_space=pltpu.MemorySpace.VMEM)

    # VMEM budget: bf16 weights + double-buffered io tiles + fp32 activations (2x headroom)
    weight_bytes = 12 * D * D * jnp.dtype(compute_dtype).itemsize + 16 * D * 4
    io_bytes = 2 * 2 * L * D * 4
    act_bytes = (L * 3 * D + L * 4 * D + n_head * L * L + 6 * L * D) * 4
    vmem_limit = int(min(120 * 2**20,
                         max(32 * 2**20, 2 * (weight_bytes + io_bytes + act_bytes))))

    kernel = functools.partial(residual_attention_kernel, d_model=D, n_head=n_head)
    out = pl.pallas_call(
        kernel,
        out_shape=jax.ShapeDtypeStruct((N, L, D), x.dtype),
        grid=(N,),
        in_specs=[
            pl.BlockSpec((1, L, D), lambda n: (n, 0, 0)),      # x tile (pipelined)
            resident, resident,                                # w_qkv, b_qkv
            resident, resident,                                # w_out, b_out
            resident, resident,                                # g1, b1
            resident, resident,                                # g2, b2
            resident, resident,                                # w_fc, b_fc
            resident, resident,                                # w_proj, b_proj
        ],
        out_specs=pl.BlockSpec((1, L, D), lambda n: (n, 0, 0)),
        compiler_params=pltpu.CompilerParams(
            dimension_semantics=("parallel",),
            vmem_limit_bytes=vmem_limit),
    )(x, w_qkv, b_qkv, w_out, b_out, g1, b1, g2, b2, w_fc, b_fc, w_proj, b_proj)
    return jnp.transpose(out, (1, 0, 2))                       # back to (L, N, D)


def reference_forward(x_lnd, p, n_head):
    """Pure-JAX fp32 reference mirroring the PyTorch module semantics."""
    L, N, D = x_lnd.shape
    hd = D // n_head

    def ln(v, g, b):
        mu = v.mean(-1, keepdims=True)
        var = ((v - mu) ** 2).mean(-1, keepdims=True)
        return (v - mu) / jnp.sqrt(var + 1e-5) * g + b

    x = x_lnd
    h = ln(x, p["g1"][0], p["b1"][0])
    qkv = h @ p["w_qkv"].T + p["b_qkv"][0]
    q, k, v = jnp.split(qkv, 3, axis=-1)
    q = q.reshape(L, N, n_head, hd) / jnp.sqrt(hd)
    k = k.reshape(L, N, n_head, hd)
    v = v.reshape(L, N, n_head, hd)
    s = jnp.einsum("lnhd,mnhd->nhlm", q, k)
    pattn = jax.nn.softmax(s, axis=-1)
    o = jnp.einsum("nhlm,mnhd->lnhd", pattn, v).reshape(L, N, D)
    o = o @ p["w_out"].T + p["b_out"][0]
    x = x + o
    h2 = ln(x, p["g2"][0], p["b2"][0])
    ff = h2 @ p["w_fc"].T + p["b_fc"][0]
    ff = ff * jax.nn.sigmoid(1.702 * ff)
    ff = ff @ p["w_proj"].T + p["b_proj"][0]
    return x + ff


if __name__ == "__main__":
    L, N, D, H = 8, 2, 32, 4                                   # seq, batch, d_model, n_head
    key = jax.random.PRNGKey(0)
    ks = jax.random.split(key, 10)

    x = jax.random.normal(ks[0], (L, N, D), dtype=jnp.float32)  # (L, N, D) torch layout
    params = {
        # nn.MultiheadAttention packed in-projection + out-projection
        "w_qkv": 0.05 * jax.random.normal(ks[1], (3 * D, D), jnp.float32),
        "b_qkv": 0.01 * jax.random.normal(ks[2], (1, 3 * D), jnp.float32),
        "w_out": 0.05 * jax.random.normal(ks[3], (D, D), jnp.float32),
        "b_out": 0.01 * jax.random.normal(ks[4], (1, D), jnp.float32),
        # LayerNorms (affine)
        "g1": jnp.ones((1, D), jnp.float32),
        "b1": jnp.zeros((1, D), jnp.float32),
        "g2": jnp.ones((1, D), jnp.float32),
        "b2": jnp.zeros((1, D), jnp.float32),
        # MLP: c_fc (D -> 4D), c_proj (4D -> D)
        "w_fc": 0.05 * jax.random.normal(ks[5], (4 * D, D), jnp.float32),
        "b_fc": 0.01 * jax.random.normal(ks[6], (1, 4 * D), jnp.float32),
        "w_proj": 0.05 * jax.random.normal(ks[7], (D, 4 * D), jnp.float32),
        "b_proj": 0.01 * jax.random.normal(ks[8], (1, D), jnp.float32),
    }

    out = residual_attention_block(x, params, n_head=H)
    out = jax.block_until_ready(out)

    ref = reference_forward(x, params, n_head=H)
    assert out.shape == (L, N, D)
    # bf16 MXU matmuls -> loosened tolerance vs. the fp32 reference
    assert jnp.allclose(out, ref, rtol=2e-2, atol=2e-2), "Pallas output mismatch vs JAX reference"

    print("KERNEL_OK")
</pallas_src>

<mosaic_0001>
module attributes {stable_mosaic.version = 11 : i64} {
  func.func @residual_attention_kernel(%arg0: i32, %arg1: memref<1x8x32xf32, #tpu.memory_space<vmem>>, %arg2: memref<32x96xbf16, #tpu.memory_space<vmem>>, %arg3: memref<1x96xf32, #tpu.memory_space<vmem>>, %arg4: memref<32x32xbf16, #tpu.memory_space<vmem>>, %arg5: memref<1x32xf32, #tpu.memory_space<vmem>>, %arg6: memref<1x32xf32, #tpu.memory_space<vmem>>, %arg7: memref<1x32xf32, #tpu.memory_space<vmem>>, %arg8: memref<1x32xf32, #tpu.memory_space<vmem>>, %arg9: memref<1x32xf32, #tpu.memory_space<vmem>>, %arg10: memref<32x128xbf16, #tpu.memory_space<vmem>>, %arg11: memref<1x128xf32, #tpu.memory_space<vmem>>, %arg12: memref<128x32xbf16, #tpu.memory_space<vmem>>, %arg13: memref<1x32xf32, #tpu.memory_space<vmem>>, %arg14: memref<1x8x32xf32, #tpu.memory_space<vmem>>) attributes {dimension_semantics = [#tpu.dimension_semantics<parallel>], iteration_bounds = array<i64: 2>, scalar_prefetch = 0 : i64, scratch_operands = 0 : i64, tpu.core_type = #tpu.core_type<tc>, window_params = [{transform_indices = @transform_0, window_bounds = array<i64: 1, 8, 32>}, {pipeline_mode = #tpu.pipeline_mode<synchronous>, transform_indices = @transform_1, window_bounds = array<i64: 32, 96>}, {pipeline_mode = #tpu.pipeline_mode<synchronous>, transform_indices = @transform_2, window_bounds = array<i64: 1, 96>}, {pipeline_mode = #tpu.pipeline_mode<synchronous>, transform_indices = @transform_3, window_bounds = array<i64: 32, 32>}, {pipeline_mode = #tpu.pipeline_mode<synchronous>, transform_indices = @transform_4, window_bounds = array<i64: 1, 32>}, {pipeline_mode = #tpu.pipeline_mode<synchronous>, transform_indices = @transform_5, window_bounds = array<i64: 1, 32>}, {pipeline_mode = #tpu.pipeline_mode<synchronous>, transform_indices = @transform_6, window_bounds = array<i64: 1, 32>}, {pipeline_mode = #tpu.pipeline_mode<synchronous>, transform_indices = @transform_7, window_bounds = array<i64: 1, 32>}, {pipeline_mode = #tpu.pipeline_mode<synchronous>, transform_indices = @transform_8, window_bounds = array<i64: 1, 32>}, {pipeline_mode = #tpu.pipeline_mode<synchronous>, transform_indices = @transform_9, window_bounds = array<i64: 32, 128>}, {pipeline_mode = #tpu.pipeline_mode<synchronous>, transform_indices = @transform_10, window_bounds = array<i64: 1, 128>}, {pipeline_mode = #tpu.pipeline_mode<synchronous>, transform_indices = @transform_11, window_bounds = array<i64: 128, 32>}, {pipeline_mode = #tpu.pipeline_mode<synchronous>, transform_indices = @transform_12, window_bounds = array<i64: 1, 32>}, {transform_indices = @transform_13, window_bounds = array<i64: 1, 8, 32>}]} {
    %c0 = arith.constant 0 : index
    %c0_0 = arith.constant 0 : index
    %c0_1 = arith.constant 0 : index
    %0 = vector.load %arg1[%c0, %c0_0, %c0_1] : memref<1x8x32xf32, #tpu.memory_space<vmem>>, vector<1x8x32xf32>
    %1 = vector.shape_cast %0 : vector<1x8x32xf32> to vector<8x32xf32>
    %c0_2 = arith.constant 0 : index
    %c0_3 = arith.constant 0 : index
    %2 = vector.load %arg6[%c0_2, %c0_3] : memref<1x32xf32, #tpu.memory_space<vmem>>, vector<1x32xf32>
    %c0_4 = arith.constant 0 : index
    %c0_5 = arith.constant 0 : index
    %3 = vector.load %arg7[%c0_4, %c0_5] : memref<1x32xf32, #tpu.memory_space<vmem>>, vector<1x32xf32>
    %cst = arith.constant dense<0.000000e+00> : vector<8xf32>
    %4 = vector.multi_reduction <add>, %1, %cst [1] : vector<8x32xf32> to vector<8xf32>
    %5 = vector.shape_cast %4 : vector<8xf32> to vector<8x1xf32>
    %cst_6 = arith.constant 3.200000e+01 : f32
    %6 = vector.broadcast %cst_6 : f32 to vector<8x1xf32>
    %7 = arith.divf %5, %6 : vector<8x1xf32>
    %8 = vector.broadcast %7 : vector<8x1xf32> to vector<8x32xf32>
    %9 = arith.subf %1, %8 : vector<8x32xf32>
    %10 = arith.mulf %9, %9 : vector<8x32xf32>
    %cst_7 = arith.constant dense<0.000000e+00> : vector<8xf32>
    %11 = vector.multi_reduction <add>, %10, %cst_7 [1] : vector<8x32xf32> to vector<8xf32>
    %12 = vector.shape_cast %11 : vector<8xf32> to vector<8x1xf32>
    %cst_8 = arith.constant 3.200000e+01 : f32
    %13 = vector.broadcast %cst_8 : f32 to vector<8x1xf32>
    %14 = arith.divf %12, %13 : vector<8x1xf32>
    %15 = vector.broadcast %7 : vector<8x1xf32> to vector<8x32xf32>
    %16 = arith.subf %1, %15 : vector<8x32xf32>
    %cst_9 = arith.constant 9.99999974E-6 : f32
    %17 = vector.broadcast %cst_9 : f32 to vector<8x1xf32>
    %18 = arith.addf %14, %17 : vector<8x1xf32>
    %19 = math.rsqrt %18 : vector<8x1xf32>
    %20 = vector.broadcast %19 : vector<8x1xf32> to vector<8x32xf32>
    %21 = arith.mulf %16, %20 : vector<8x32xf32>
    %22 = vector.broadcast %2 : vector<1x32xf32> to vector<8x32xf32>
    %23 = arith.mulf %21, %22 : vector<8x32xf32>
    %24 = vector.broadcast %3 : vector<1x32xf32> to vector<8x32xf32>
    %25 = arith.addf %23, %24 : vector<8x32xf32>
    %26 = arith.truncf %25 : vector<8x32xf32> to vector<8x32xbf16>
    %c0_10 = arith.constant 0 : index
    %c0_11 = arith.constant 0 : index
    %27 = vector.load %arg2[%c0_10, %c0_11] : memref<32x96xbf16, #tpu.memory_space<vmem>>, vector<32x96xbf16>
    %cst_12 = arith.constant dense<0.000000e+00> : vector<8x96xf32>
    %28 = tpu.matmul %26, %27, %cst_12 {dimension_numbers = #tpu.dot_dimension_numbers<[1], [0], [0], [1], [0, 0, 1, 1], [], []>} : vector<8x32xbf16>, vector<32x96xbf16>, vector<8x96xf32> -> vector<8x96xf32>
    %c0_13 = arith.constant 0 : index
    %c0_14 = arith.constant 0 : index
    %29 = vector.load %arg3[%c0_13, %c0_14] : memref<1x96xf32, #tpu.memory_space<vmem>>, vector<1x96xf32>
    %30 = vector.broadcast %29 : vector<1x96xf32> to vector<8x96xf32>
    %31 = arith.addf %28, %30 : vector<8x96xf32>
    %32 = vector.extract_strided_slice %31 {offsets = [0, 0], sizes = [8, 32], strides = [1, 1]} : vector<8x96xf32> to vector<8x32xf32>
    %33 = vector.shape_cast %32 : vector<8x32xf32> to vector<8x4x8xf32>
    %34 = tpu.transpose %33, [1, 0, 2] : vector<8x4x8xf32> -> vector<4x8x8xf32>
    %35 = arith.truncf %34 : vector<4x8x8xf32> to vector<4x8x8xbf16>
    %36 = vector.extract_strided_slice %31 {offsets = [0, 32], sizes = [8, 32], strides = [1, 1]} : vector<8x96xf32> to vector<8x32xf32>
    %37 = vector.shape_cast %36 : vector<8x32xf32> to vector<8x4x8xf32>
    %38 = tpu.transpose %37, [1, 0, 2] : vector<8x4x8xf32> -> vector<4x8x8xf32>
    %39 = arith.truncf %38 : vector<4x8x8xf32> to vector<4x8x8xbf16>
    %40 = vector.extract_strided_slice %31 {offsets = [0, 64], sizes = [8, 32], strides = [1, 1]} : vector<8x96xf32> to vector<8x32xf32>
    %41 = vector.shape_cast %40 : vector<8x32xf32> to vector<8x4x8xf32>
    %42 = tpu.transpose %41, [1, 0, 2] : vector<8x4x8xf32> -> vector<4x8x8xf32>
    %43 = arith.truncf %42 : vector<4x8x8xf32> to vector<4x8x8xbf16>
    "tpu.trace_start"() <{level = 10 : i32, message = "hqd,hkd->hqk"}> : () -> ()
    %cst_15 = arith.constant dense<0.000000e+00> : vector<4x8x8xf32>
    %44 = tpu.matmul %35, %39, %cst_15 {dimension_numbers = #tpu.dot_dimension_numbers<[2], [2], [1], [1], [0, 0, 0, 1, 1, 1], [0], [0]>} : vector<4x8x8xbf16>, vector<4x8x8xbf16>, vector<4x8x8xf32> -> vector<4x8x8xf32>
    "tpu.trace_stop"() : () -> ()
    %cst_16 = arith.constant dense<0xFF800000> : vector<4x8xf32>
    %45 = vector.multi_reduction <maximumf>, %44, %cst_16 [2] : vector<4x8x8xf32> to vector<4x8xf32>
    %46 = vector.shape_cast %45 : vector<4x8xf32> to vector<4x8x1xf32>
    %47 = vector.broadcast %46 : vector<4x8x1xf32> to vector<4x8x8xf32>
    %48 = arith.subf %44, %47 : vector<4x8x8xf32>
    %49 = math.exp %48 : vector<4x8x8xf32>
    %cst_17 = arith.constant dense<0.000000e+00> : vector<4x8xf32>
    %50 = vector.multi_reduction <add>, %49, %cst_17 [2] : vector<4x8x8xf32> to vector<4x8xf32>
    %51 = vector.shape_cast %50 : vector<4x8xf32> to vector<4x8x1xf32>
    %52 = tpu.reciprocal %51 {approx = true} : vector<4x8x1xf32> -> vector<4x8x1xf32>
    %53 = vector.broadcast %52 : vector<4x8x1xf32> to vector<4x8x8xf32>
    %54 = arith.mulf %49, %53 : vector<4x8x8xf32>
    %55 = arith.truncf %54 : vector<4x8x8xf32> to vector<4x8x8xbf16>
    "tpu.trace_start"() <{level = 10 : i32, message = "hqk,hkd->hqd"}> : () -> ()
    %cst_18 = arith.constant dense<0.000000e+00> : vector<4x8x8xf32>
    %56 = tpu.matmul %55, %43, %cst_18 {dimension_numbers = #tpu.dot_dimension_numbers<[2], [1], [1], [2], [0, 0, 0, 1, 1, 2], [0], [0]>} : vector<4x8x8xbf16>, vector<4x8x8xbf16>, vector<4x8x8xf32> -> vector<4x8x8xf32>
    "tpu.trace_stop"() : () -> ()
    %57 = tpu.transpose %56, [1, 0, 2] : vector<4x8x8xf32> -> vector<8x4x8xf32>
    %58 = vector.shape_cast %57 : vector<8x4x8xf32> to vector<8x32xf32>
    %59 = arith.truncf %58 : vector<8x32xf32> to vector<8x32xbf16>
    %c0_19 = arith.constant 0 : index
    %c0_20 = arith.constant 0 : index
    %60 = vector.load %arg4[%c0_19, %c0_20] : memref<32x32xbf16, #tpu.memory_space<vmem>>, vector<32x32xbf16>
    %cst_21 = arith.constant dense<0.000000e+00> : vector<8x32xf32>
    %61 = tpu.matmul %59, %60, %cst_21 {dimension_numbers = #tpu.dot_dimension_numbers<[1], [0], [0], [1], [0, 0, 1, 1], [], []>} : vector<8x32xbf16>, vector<32x32xbf16>, vector<8x32xf32> -> vector<8x32xf32>
    %c0_22 = arith.constant 0 : index
    %c0_23 = arith.constant 0 : index
    %62 = vector.load %arg5[%c0_22, %c0_23] : memref<1x32xf32, #tpu.memory_space<vmem>>, vector<1x32xf32>
    %63 = vector.broadcast %62 : vector<1x32xf32> to vector<8x32xf32>
    %64 = arith.addf %61, %63 : vector<8x32xf32>
    %65 = arith.addf %1, %64 : vector<8x32xf32>
    %c0_24 = arith.constant 0 : index
    %c0_25 = arith.constant 0 : index
    %66 = vector.load %arg8[%c0_24, %c0_25] : memref<1x32xf32, #tpu.memory_space<vmem>>, vector<1x32xf32>
    %c0_26 = arith.constant 0 : index
    %c0_27 = arith.constant 0 : index
    %67 = vector.load %arg9[%c0_26, %c0_27] : memref<1x32xf32, #tpu.memory_space<vmem>>, vector<1x32xf32>
    %cst_28 = arith.constant dense<0.000000e+00> : vector<8xf32>
    %68 = vector.multi_reduction <add>, %65, %cst_28 [1] : vector<8x32xf32> to vector<8xf32>
    %69 = vector.shape_cast %68 : vector<8xf32> to vector<8x1xf32>
    %cst_29 = arith.constant 3.200000e+01 : f32
    %70 = vector.broadcast %cst_29 : f32 to vector<8x1xf32>
    %71 = arith.divf %69, %70 : vector<8x1xf32>
    %72 = vector.broadcast %71 : vector<8x1xf32> to vector<8x32xf32>
    %73 = arith.subf %65, %72 : vector<8x32xf32>
    %74 = arith.mulf %73, %73 : vector<8x32xf32>
    %cst_30 = arith.constant dense<0.000000e+00> : vector<8xf32>
    %75 = vector.multi_reduction <add>, %74, %cst_30 [1] : vector<8x32xf32> to vector<8xf32>
    %76 = vector.shape_cast %75 : vector<8xf32> to vector<8x1xf32>
    %cst_31 = arith.constant 3.200000e+01 : f32
    %77 = vector.broadcast %cst_31 : f32 to vector<8x1xf32>
    %78 = arith.divf %76, %77 : vector<8x1xf32>
    %79 = vector.broadcast %71 : vector<8x1xf32> to vector<8x32xf32>
    %80 = arith.subf %65, %79 : vector<8x32xf32>
    %cst_32 = arith.constant 9.99999974E-6 : f32
    %81 = vector.broadcast %cst_32 : f32 to vector<8x1xf32>
    %82 = arith.addf %78, %81 : vector<8x1xf32>
    %83 = math.rsqrt %82 : vector<8x1xf32>
    %84 = vector.broadcast %83 : vector<8x1xf32> to vector<8x32xf32>
    %85 = arith.mulf %80, %84 : vector<8x32xf32>
    %86 = vector.broadcast %66 : vector<1x32xf32> to vector<8x32xf32>
    %87 = arith.mulf %85, %86 : vector<8x32xf32>
    %88 = vector.broadcast %67 : vector<1x32xf32> to vector<8x32xf32>
    %89 = arith.addf %87, %88 : vector<8x32xf32>
    %90 = arith.truncf %89 : vector<8x32xf32> to vector<8x32xbf16>
    %c0_33 = arith.constant 0 : index
    %c0_34 = arith.constant 0 : index
    %91 = vector.load %arg10[%c0_33, %c0_34] : memref<32x128xbf16, #tpu.memory_space<vmem>>, vector<32x128xbf16>
    %cst_35 = arith.constant dense<0.000000e+00> : vector<8x128xf32>
    %92 = tpu.matmul %90, %91, %cst_35 {dimension_numbers = #tpu.dot_dimension_numbers<[1], [0], [0], [1], [0, 0, 1, 1], [], []>} : vector<8x32xbf16>, vector<32x128xbf16>, vector<8x128xf32> -> vector<8x128xf32>
    %c0_36 = arith.constant 0 : index
    %c0_37 = arith.constant 0 : index
    %93 = vector.load %arg11[%c0_36, %c0_37] : memref<1x128xf32, #tpu.memory_space<vmem>>, vector<1x128xf32>
    %94 = vector.broadcast %93 : vector<1x128xf32> to vector<8x128xf32>
    %95 = arith.addf %92, %94 : vector<8x128xf32>
    %cst_38 = arith.constant 1.702000e+00 : f32
    %96 = vector.broadcast %cst_38 : f32 to vector<8x128xf32>
    %97 = arith.mulf %96, %95 : vector<8x128xf32>
    %98 = arith.negf %97 : vector<8x128xf32>
    %99 = math.exp %98 : vector<8x128xf32>
    %cst_39 = arith.constant 1.000000e+00 : f32
    %100 = vector.broadcast %cst_39 : f32 to vector<8x128xf32>
    %101 = arith.addf %100, %99 : vector<8x128xf32>
    %102 = arith.divf %100, %101 : vector<8x128xf32>
    %103 = arith.mulf %95, %102 : vector<8x128xf32>
    %104 = arith.truncf %103 : vector<8x128xf32> to vector<8x128xbf16>
    %c0_40 = arith.constant 0 : index
    %c0_41 = arith.constant 0 : index
    %105 = vector.load %arg12[%c0_40, %c0_41] : memref<128x32xbf16, #tpu.memory_space<vmem>>, vector<128x32xbf16>
    %cst_42 = arith.constant dense<0.000000e+00> : vector<8x32xf32>
    %106 = tpu.matmul %104, %105, %cst_42 {dimension_numbers = #tpu.dot_dimension_numbers<[1], [0], [0], [1], [0, 0, 1, 1], [], []>} : vector<8x128xbf16>, vector<128x32xbf16>, vector<8x32xf32> -> vector<8x32xf32>
    %c0_43 = arith.constant 0 : index
    %c0_44 = arith.constant 0 : index
    %107 = vector.load %arg13[%c0_43, %c0_44] : memref<1x32xf32, #tpu.memory_space<vmem>>, vector<1x32xf32>
    %108 = vector.broadcast %107 : vector<1x32xf32> to vector<8x32xf32>
    %109 = arith.addf %106, %108 : vector<8x32xf32>
    %110 = arith.addf %65, %109 : vector<8x32xf32>
    %c0_45 = arith.constant 0 : index
    %c0_46 = arith.constant 0 : index
    %c0_47 = arith.constant 0 : index
    %111 = vector.load %arg14[%c0_45, %c0_46, %c0_47] : memref<1x8x32xf32, #tpu.memory_space<vmem>>, vector<1x8x32xf32>
    %112 = vector.shape_cast %111 : vector<1x8x32xf32> to vector<8x32xf32>
    %113 = vector.shape_cast %110 : vector<8x32xf32> to vector<1x8x32xf32>
    tpu.vector_store %arg14[%c0_45, %c0_46, %c0_47], %113 {strides = array<i32>} : memref<1x8x32xf32, #tpu.memory_space<vmem>>, vector<1x8x32xf32>,
    return
  }
  func.func @transform_0(%arg0: i32) -> (i32, i32, i32) {
    %c0_i32 = arith.constant 0 : i32
    %c0_i32_0 = arith.constant 0 : i32
    %c0_i32_1 = arith.constant 0 : i32
    return %arg0, %c0_i32, %c0_i32_0 : i32, i32, i32
  }
  func.func @transform_1(%arg0: i32) -> (i32, i32) {
    %c0_i32 = arith.constant 0 : i32
    %c0_i32_0 = arith.constant 0 : i32
    %c0_i32_1 = arith.constant 0 : i32
    return %c0_i32, %c0_i32_0 : i32, i32
  }
  func.func @transform_2(%arg0: i32) -> (i32, i32) {
    %c0_i32 = arith.constant 0 : i32
    %c0_i32_0 = arith.constant 0 : i32
    %c0_i32_1 = arith.constant 0 : i32
    return %c0_i32, %c0_i32_0 : i32, i32
  }
  func.func @transform_3(%arg0: i32) -> (i32, i32) {
    %c0_i32 = arith.constant 0 : i32
    %c0_i32_0 = arith.constant 0 : i32
    %c0_i32_1 = arith.constant 0 : i32
    return %c0_i32, %c0_i32_0 : i32, i32
  }
  func.func @transform_4(%arg0: i32) -> (i32, i32) {
    %c0_i32 = arith.constant 0 : i32
    %c0_i32_0 = arith.constant 0 : i32
    %c0_i32_1 = arith.constant 0 : i32
    return %c0_i32, %c0_i32_0 : i32, i32
  }
  func.func @transform_5(%arg0: i32) -> (i32, i32) {
    %c0_i32 = arith.constant 0 : i32
    %c0_i32_0 = arith.constant 0 : i32
    %c0_i32_1 = arith.constant 0 : i32
    return %c0_i32, %c0_i32_0 : i32, i32
  }
  func.func @transform_6(%arg0: i32) -> (i32, i32) {
    %c0_i32 = arith.constant 0 : i32
    %c0_i32_0 = arith.constant 0 : i32
    %c0_i32_1 = arith.constant 0 : i32
    return %c0_i32, %c0_i32_0 : i32, i32
  }
  func.func @transform_7(%arg0: i32) -> (i32, i32) {
    %c0_i32 = arith.constant 0 : i32
    %c0_i32_0 = arith.constant 0 : i32
    %c0_i32_1 = arith.constant 0 : i32
    return %c0_i32, %c0_i32_0 : i32, i32
  }
  func.func @transform_8(%arg0: i32) -> (i32, i32) {
    %c0_i32 = arith.constant 0 : i32
    %c0_i32_0 = arith.constant 0 : i32
    %c0_i32_1 = arith.constant 0 : i32
    return %c0_i32, %c0_i32_0 : i32, i32
  }
  func.func @transform_9(%arg0: i32) -> (i32, i32) {
    %c0_i32 = arith.constant 0 : i32
    %c0_i32_0 = arith.constant 0 : i32
    %c0_i32_1 = arith.constant 0 : i32
    return %c0_i32, %c0_i32_0 : i32, i32
  }
  func.func @transform_10(%arg0: i32) -> (i32, i32) {
    %c0_i32 = arith.constant 0 : i32
    %c0_i32_0 = arith.constant 0 : i32
    %c0_i32_1 = arith.constant 0 : i32
    return %c0_i32, %c0_i32_0 : i32, i32
  }
  func.func @transform_11(%arg0: i32) -> (i32, i32) {
    %c0_i32 = arith.constant 0 : i32
    %c0_i32_0 = arith.constant 0 : i32
    %c0_i32_1 = arith.constant 0 : i32
    return %c0_i32, %c0_i32_0 : i32, i32
  }
  func.func @transform_12(%arg0: i32) -> (i32, i32) {
    %c0_i32 = arith.constant 0 : i32
    %c0_i32_0 = arith.constant 0 : i32
    %c0_i32_1 = arith.constant 0 : i32
    return %c0_i32, %c0_i32_0 : i32, i32
  }
  func.func @transform_13(%arg0: i32) -> (i32, i32, i32) {
    %c0_i32 = arith.constant 0 : i32
    %c0_i32_0 = arith.constant 0 : i32
    %c0_i32_1 = arith.constant 0 : i32
    return %arg0, %c0_i32, %c0_i32_0 : i32, i32, i32
  }
}

</mosaic_0001>

<llo_original>
// kernel: tpu_custom_call.1
$region0: #{tpu_custom_call.1}
  #allocation0 [shape = 'u32[]', space=smem, size = 0x4, offset = 0x4, fixed_abs, tag = 'smem constant byte address 0x4 - core index']
  #allocation1 [shape = 'u32[144,128]{1,0:T(1,128)}', space=vmem, size = 0x12000, scoped, tag = 'internal scratch']
  %s0 = inlined_call_operand.vmem [shape: f32[2,8,32], index: 0, kind: input, shape index: {}]
  %s1 = inlined_call_operand.vmem [shape: bf16[32,96], index: 1, kind: input, shape index: {}]
  %s2 = inlined_call_operand.vmem [shape: f32[1,96], index: 2, kind: input, shape index: {}]
  %s3 = inlined_call_operand.vmem [shape: bf16[32,32], index: 3, kind: input, shape index: {}]
  %s4 = inlined_call_operand.vmem [shape: f32[1,32], index: 4, kind: input, shape index: {}]
  %s5 = inlined_call_operand.vmem [shape: f32[1,32], index: 5, kind: input, shape index: {}]
  %s6 = inlined_call_operand.vmem [shape: f32[1,32], index: 6, kind: input, shape index: {}]
  %s7 = inlined_call_operand.vmem [shape: f32[1,32], index: 7, kind: input, shape index: {}]
  %s8 = inlined_call_operand.vmem [shape: f32[1,32], index: 8, kind: input, shape index: {}]
  %s9 = inlined_call_operand.vmem [shape: bf16[32,128], index: 9, kind: input, shape index: {}]
  %s10 = inlined_call_operand.vmem [shape: f32[1,128], index: 10, kind: input, shape index: {}]
  %s11 = inlined_call_operand.vmem [shape: bf16[128,32], index: 11, kind: input, shape index: {}]
  %s12 = inlined_call_operand.vmem [shape: f32[1,32], index: 12, kind: input, shape index: {}]
  %s13 = inlined_call_operand.hbm [shape: f32[2,8,32], index: 13, kind: output, shape index: {}]
  %s14 = sld [smem:[#allocation0]]
  $region85: #{tpu_custom_call.1} parent=0
    _
  %s16 = ssub.s32 1, %s14
  %s17 = scalar_select 0, %s16, %s14
  $region1: #{tpu_custom_call.1} parent=0
    #allocation2 [shape = 'u8[8192]{0}', space=vmem, size = 0x2000, scoped, tag = 'output window, operand 0']
    #allocation3 [shape = 's32[2]{0}', space=sflag, size = 0x8, scoped, tag = 'scoped memory for tpu_custom_call.1']
    %18 = vsyncpa [#allocation3], 0
    %s19 = scalar_lea.sflag [#allocation3], 1
    %20 = vsyncpa %s19, 0
    loop: start=0, step=1, limit=4
    $region2: #{tpu_custom_call.1} parent=1 // loop_pre_header
      _
    $region3: #{tpu_custom_call.1} parent=1 // loop_header
      %s22 = sphi 0, %s26
      %p23 = scmp.ge.s32.totalorder %s22, 4
      %s32 = sphi 0, %s34
      %s35 = sphi 0, %s32
      %s36 = sphi 0, %s35
      %s52 = sphi 0, %s36
      %s56 = sphi 0, %s56
      %s58 = sphi 0, %s56
      %s59 = sphi 0, %s58
      %s73 = sphi 0, %s59
      %s77 = sphi 0, %s77
      %s79 = sphi 0, %s77
      %s80 = sphi 0, %s79
      %s94 = sphi 0, %s80
      %s98 = sphi 0, %s98
      %s100 = sphi 0, %s98
      %s101 = sphi 0, %s100
      %s115 = sphi 0, %s101
      %s119 = sphi 0, %s119
      %s121 = sphi 0, %s119
      %s122 = sphi 0, %s121
      %s136 = sphi 0, %s122
      %s140 = sphi 0, %s140
      %s142 = sphi 0, %s140
      %s143 = sphi 0, %s142
      %s157 = sphi 0, %s143
      %s161 = sphi 0, %s161
      %s163 = sphi 0, %s161
      %s164 = sphi 0, %s163
      %s178 = sphi 0, %s164
      %s182 = sphi 0, %s182
      %s184 = sphi 0, %s182
      %s185 = sphi 0, %s184
      %s199 = sphi 0, %s185
      %s203 = sphi 0, %s203
      %s205 = sphi 0, %s203
      %s206 = sphi 0, %s205
      %s220 = sphi 0, %s206
      %s224 = sphi 0, %s224
      %s226 = sphi 0, %s224
      %s227 = sphi 0, %s226
      %s241 = sphi 0, %s227
      %s245 = sphi 0, %s245
      %s247 = sphi 0, %s245
      %s248 = sphi 0, %s247
      %s262 = sphi 0, %s248
      %s266 = sphi 0, %s266
      %s268 = sphi 0, %s266
      %s269 = sphi 0, %s268
      %s283 = sphi 0, %s269
      %s287 = sphi 0, %s287
      %s289 = sphi 0, %s287
      %s290 = sphi 0, %s289
      %s304 = sphi 0, %s290
      %s310 = sphi 0, %s312
      %s313 = sphi 0, %s310
      %s314 = sphi 0, %s313
      %s330 = sphi 0, %s314
    $region4: #{tpu_custom_call.1} parent=1 // loop_header_branch
      %25 = sbr.rel (%p23) target = $region8
    $region5: #{tpu_custom_call.1} parent=1 // loop_body
      %s27 = ssub.s32 %s22, 1
      %s28 = ssub.s32 %s22, 2
      %s29 = sadd.s32 %s22, 1
      %s30 = ssub.s32 %s22, %s29
      %p31 = scmp.eq.s32.totalorder %s30, 0
      %s33 = sadd.s32 %s32, 1
      %s34 = scalar_select %p31, %s32, %s33
      %p37 = pneg %p31
      %p38 = scmp.eq.s32.totalorder %s22, 1
      %p39 = por %p37, %p38
      %p40 = scmp.ne.s32.totalorder %s32, %s35
      %p41 = scmp.eq.s32.totalorder %s22, 0
      %p42 = por %p40, %p41
      %p43 = scmp.ne.s32.totalorder %s32, %s35
      %p44 = scmp.eq.s32.totalorder %s27, 1
      %p45 = por %p43, %p44
      %p46 = scmp.ne.s32.totalorder %s35, %s36
      %p47 = scmp.eq.s32.totalorder %s27, 0
      %p48 = por %p46, %p47
      %p49 = scmp.ne.s32.totalorder %s35, %s36
      %p50 = scmp.eq.s32.totalorder %s28, 1
      %p51 = por %p49, %p50
      %p53 = scmp.ne.s32.totalorder %s36, %s52
      %p54 = scmp.eq.s32.totalorder %s28, 0
      %p55 = por %p53, %p54
      %s57 = sadd.s32 %s56, 1
      %p60 = scmp.eq.s32.totalorder %s22, 1
      %p61 = scmp.ne.s32.totalorder %s56, %s58
      %p62 = scmp.eq.s32.totalorder %s22, 0
      %p63 = por %p61, %p62
      %p64 = scmp.ne.s32.totalorder %s56, %s58
      %p65 = scmp.eq.s32.totalorder %s27, 1
      %p66 = por %p64, %p65
      %p67 = scmp.ne.s32.totalorder %s58, %s59
      %p68 = scmp.eq.s32.totalorder %s27, 0
      %p69 = por %p67, %p68
      %p70 = scmp.ne.s32.totalorder %s58, %s59
      %p71 = scmp.eq.s32.totalorder %s28, 1
      %p72 = por %p70, %p71
      %p74 = scmp.ne.s32.totalorder %s59, %s73
      %p75 = scmp.eq.s32.totalorder %s28, 0
      %p76 = por %p74, %p75
      %s78 = sadd.s32 %s77, 1
      %p81 = scmp.eq.s32.totalorder %s22, 1
      %p82 = scmp.ne.s32.totalorder %s77, %s79
      %p83 = scmp.eq.s32.totalorder %s22, 0
      %p84 = por %p82, %p83
      %p85 = scmp.ne.s32.totalorder %s77, %s79
      %p86 = scmp.eq.s32.totalorder %s27, 1
      %p87 = por %p85, %p86
      %p88 = scmp.ne.s32.totalorder %s79, %s80
      %p89 = scmp.eq.s32.totalorder %s27, 0
      %p90 = por %p88, %p89
      %p91 = scmp.ne.s32.totalorder %s79, %s80
      %p92 = scmp.eq.s32.totalorder %s28, 1
      %p93 = por %p91, %p92
      %p95 = scmp.ne.s32.totalorder %s80, %s94
      %p96 = scmp.eq.s32.totalorder %s28, 0
      %p97 = por %p95, %p96
      %s99 = sadd.s32 %s98, 1
      %p102 = scmp.eq.s32.totalorder %s22, 1
      %p103 = scmp.ne.s32.totalorder %s98, %s100
      %p104 = scmp.eq.s32.totalorder %s22, 0
      %p105 = por %p103, %p104
      %p106 = scmp.ne.s32.totalorder %s98, %s100
      %p107 = scmp.eq.s32.totalorder %s27, 1
      %p108 = por %p106, %p107
      %p109 = scmp.ne.s32.totalorder %s100, %s101
      %p110 = scmp.eq.s32.totalorder %s27, 0
      %p111 = por %p109, %p110
      %p112 = scmp.ne.s32.totalorder %s100, %s101
      %p113 = scmp.eq.s32.totalorder %s28, 1
      %p114 = por %p112, %p113
      %p116 = scmp.ne.s32.totalorder %s101, %s115
      %p117 = scmp.eq.s32.totalorder %s28, 0
      %p118 = por %p116, %p117
      %s120 = sadd.s32 %s119, 1
      %p123 = scmp.eq.s32.totalorder %s22, 1
      %p124 = scmp.ne.s32.totalorder %s119, %s121
      %p125 = scmp.eq.s32.totalorder %s22, 0
      %p126 = por %p124, %p125
      %p127 = scmp.ne.s32.totalorder %s119, %s121
      %p128 = scmp.eq.s32.totalorder %s27, 1
      %p129 = por %p127, %p128
      %p130 = scmp.ne.s32.totalorder %s121, %s122
      %p131 = scmp.eq.s32.totalorder %s27, 0
      %p132 = por %p130, %p131
      %p133 = scmp.ne.s32.totalorder %s121, %s122
      %p134 = scmp.eq.s32.totalorder %s28, 1
      %p135 = por %p133, %p134
      %p137 = scmp.ne.s32.totalorder %s122, %s136
      %p138 = scmp.eq.s32.totalorder %s28, 0
      %p139 = por %p137, %p138
      %s141 = sadd.s32 %s140, 1
      %p144 = scmp.eq.s32.totalorder %s22, 1
      %p145 = scmp.ne.s32.totalorder %s140, %s142
      %p146 = scmp.eq.s32.totalorder %s22, 0
      %p147 = por %p145, %p146
      %p148 = scmp.ne.s32.totalorder %s140, %s142
      %p149 = scmp.eq.s32.totalorder %s27, 1
      %p150 = por %p148, %p149
      %p151 = scmp.ne.s32.totalorder %s142, %s143
      %p152 = scmp.eq.s32.totalorder %s27, 0
      %p153 = por %p151, %p152
      %p154 = scmp.ne.s32.totalorder %s142, %s143
      %p155 = scmp.eq.s32.totalorder %s28, 1
      %p156 = por %p154, %p155
      %p158 = scmp.ne.s32.totalorder %s143, %s157
      %p159 = scmp.eq.s32.totalorder %s28, 0
      %p160 = por %p158, %p159
      %s162 = sadd.s32 %s161, 1
      %p165 = scmp.eq.s32.totalorder %s22, 1
      %p166 = scmp.ne.s32.totalorder %s161, %s163
      %p167 = scmp.eq.s32.totalorder %s22, 0
      %p168 = por %p166, %p167
      %p169 = scmp.ne.s32.totalorder %s161, %s163
      %p170 = scmp.eq.s32.totalorder %s27, 1
      %p171 = por %p169, %p170
      %p172 = scmp.ne.s32.totalorder %s163, %s164
      %p173 = scmp.eq.s32.totalorder %s27, 0
      %p174 = por %p172, %p173
      %p175 = scmp.ne.s32.totalorder %s163, %s164
      %p176 = scmp.eq.s32.totalorder %s28, 1
      %p177 = por %p175, %p176
      %p179 = scmp.ne.s32.totalorder %s164, %s178
      %p180 = scmp.eq.s32.totalorder %s28, 0
      %p181 = por %p179, %p180
      %s183 = sadd.s32 %s182, 1
      %p186 = scmp.eq.s32.totalorder %s22, 1
      %p187 = scmp.ne.s32.totalorder %s182, %s184
      %p188 = scmp.eq.s32.totalorder %s22, 0
      %p189 = por %p187, %p188
      %p190 = scmp.ne.s32.totalorder %s182, %s184
      %p191 = scmp.eq.s32.totalorder %s27, 1
      %p192 = por %p190, %p191
      %p193 = scmp.ne.s32.totalorder %s184, %s185
      %p194 = scmp.eq.s32.totalorder %s27, 0
      %p195 = por %p193, %p194
      %p196 = scmp.ne.s32.totalorder %s184, %s185
      %p197 = scmp.eq.s32.totalorder %s28, 1
      %p198 = por %p196, %p197
      %p200 = scmp.ne.s32.totalorder %s185, %s199
      %p201 = scmp.eq.s32.totalorder %s28, 0
      %p202 = por %p200, %p201
      %s204 = sadd.s32 %s203, 1
      %p207 = scmp.eq.s32.totalorder %s22, 1
      %p208 = scmp.ne.s32.totalorder %s203, %s205
      %p209 = scmp.eq.s32.totalorder %s22, 0
      %p210 = por %p208, %p209
      %p211 = scmp.ne.s32.totalorder %s203, %s205
      %p212 = scmp.eq.s32.totalorder %s27, 1
      %p213 = por %p211, %p212
      %p214 = scmp.ne.s32.totalorder %s205, %s206
      %p215 = scmp.eq.s32.totalorder %s27, 0
      %p216 = por %p214, %p215
      %p217 = scmp.ne.s32.totalorder %s205, %s206
      %p218 = scmp.eq.s32.totalorder %s28, 1
      %p219 = por %p217, %p218
      %p221 = scmp.ne.s32.totalorder %s206, %s220
      %p222 = scmp.eq.s32.totalorder %s28, 0
      %p223 = por %p221, %p222
      %s225 = sadd.s32 %s224, 1
      %p228 = scmp.eq.s32.totalorder %s22, 1
      %p229 = scmp.ne.s32.totalorder %s224, %s226
      %p230 = scmp.eq.s32.totalorder %s22, 0
      %p231 = por %p229, %p230
      %p232 = scmp.ne.s32.totalorder %s224, %s226
      %p233 = scmp.eq.s32.totalorder %s27, 1
      %p234 = por %p232, %p233
      %p235 = scmp.ne.s32.totalorder %s226, %s227
      %p236 = scmp.eq.s32.totalorder %s27, 0
      %p237 = por %p235, %p236
      %p238 = scmp.ne.s32.totalorder %s226, %s227
      %p239 = scmp.eq.s32.totalorder %s28, 1
      %p240 = por %p238, %p239
      %p242 = scmp.ne.s32.totalorder %s227, %s241
      %p243 = scmp.eq.s32.totalorder %s28, 0
      %p244 = por %p242, %p243
      %s246 = sadd.s32 %s245, 1
      %p249 = scmp.eq.s32.totalorder %s22, 1
      %p250 = scmp.ne.s32.totalorder %s245, %s247
      %p251 = scmp.eq.s32.totalorder %s22, 0
      %p252 = por %p250, %p251
      %p253 = scmp.ne.s32.totalorder %s245, %s247
      %p254 = scmp.eq.s32.totalorder %s27, 1
      %p255 = por %p253, %p254
      %p256 = scmp.ne.s32.totalorder %s247, %s248
      %p257 = scmp.eq.s32.totalorder %s27, 0
      %p258 = por %p256, %p257
      %p259 = scmp.ne.s32.totalorder %s247, %s248
      %p260 = scmp.eq.s32.totalorder %s28, 1
      %p261 = por %p259, %p260
      %p263 = scmp.ne.s32.totalorder %s248, %s262
      %p264 = scmp.eq.s32.totalorder %s28, 0
      %p265 = por %p263, %p264
      %s267 = sadd.s32 %s266, 1
      %p270 = scmp.eq.s32.totalorder %s22, 1
      %p271 = scmp.ne.s32.totalorder %s266, %s268
      %p272 = scmp.eq.s32.totalorder %s22, 0
      %p273 = por %p271, %p272
      %p274 = scmp.ne.s32.totalorder %s266, %s268
      %p275 = scmp.eq.s32.totalorder %s27, 1
      %p276 = por %p274, %p275
      %p277 = scmp.ne.s32.totalorder %s268, %s269
      %p278 = scmp.eq.s32.totalorder %s27, 0
      %p279 = por %p277, %p278
      %p280 = scmp.ne.s32.totalorder %s268, %s269
      %p281 = scmp.eq.s32.totalorder %s28, 1
      %p282 = por %p280, %p281
      %p284 = scmp.ne.s32.totalorder %s269, %s283
      %p285 = scmp.eq.s32.totalorder %s28, 0
      %p286 = por %p284, %p285
      %s288 = sadd.s32 %s287, 1
      %p291 = scmp.eq.s32.totalorder %s22, 1
      %p292 = scmp.ne.s32.totalorder %s287, %s289
      %p293 = scmp.eq.s32.totalorder %s22, 0
      %p294 = por %p292, %p293
      %p295 = scmp.ne.s32.totalorder %s287, %s289
      %p296 = scmp.eq.s32.totalorder %s27, 1
      %p297 = por %p295, %p296
      %p298 = scmp.ne.s32.totalorder %s289, %s290
      %p299 = scmp.eq.s32.totalorder %s27, 0
      %p300 = por %p298, %p299
      %p301 = scmp.ne.s32.totalorder %s289, %s290
      %p302 = scmp.eq.s32.totalorder %s28, 1
      %p303 = por %p301, %p302
      %p305 = scmp.ne.s32.totalorder %s290, %s304
      %p306 = scmp.eq.s32.totalorder %s28, 0
      %p307 = por %p305, %p306
      %s308 = ssub.s32 %s22, %s29
      %p309 = scmp.eq.s32.totalorder %s308, 0
      %s311 = sadd.s32 %s310, 1
      %s312 = scalar_select %p309, %s310, %s311
      %p315 = pneg %p309
      %p316 = scmp.eq.s32.totalorder %s22, 1
      %p317 = por %p315, %p316
      %p318 = scmp.ne.s32.totalorder %s310, %s313
      %p319 = scmp.eq.s32.totalorder %s22, 0
      %p320 = por %p318, %p319
      %p321 = scmp.ne.s32.totalorder %s310, %s313
      %p322 = scmp.eq.s32.totalorder %s27, 1
      %p323 = por %p321, %p322
      %p324 = scmp.ne.s32.totalorder %s313, %s314
      %p325 = scmp.eq.s32.totalorder %s27, 0
      %p326 = por %p324, %p325
      %p327 = scmp.ne.s32.totalorder %s313, %s314
      %p328 = scmp.eq.s32.totalorder %s28, 1
      %p329 = por %p327, %p328
      %p331 = scmp.ne.s32.totalorder %s314, %s330
      %p332 = scmp.eq.s32.totalorder %s28, 0
      %p333 = por %p331, %p332
      %p334 = scmp.le.s32.totalorder 1, %s22
      %p335 = scmp.lt.s32.totalorder %s22, 3
      %p336 = pnand %p334, %p335
      %p337 = pneg %p336
      // Predicated region
      $region9: #{tpu_custom_call.1} parent=5 // pred_check
        _
      $region10: #{tpu_custom_call.1} parent=5 // pred_check_branch
        %339 = sbr.rel (%p336) target = $region12
      $region11: #{tpu_custom_call.1} parent=5 // pred_region
        %s340 = ssub.s32 %s22, 1
        // Predicated region
        $region13: #{tpu_custom_call.1} parent=11 // pred_check
          %p341 = pneg %p69
        $region14: #{tpu_custom_call.1} parent=11 // pred_check_branch
          %343 = sbr.rel (%p341) target = $region16
        $region15: #{tpu_custom_call.1} parent=11 // pred_region
          _
        $region16: #{tpu_custom_call.1} parent=11 // pred_fallthru
          _
        // Predicated region
        $region17: #{tpu_custom_call.1} parent=11 // pred_check
          %p344 = pneg %p90
        $region18: #{tpu_custom_call.1} parent=11 // pred_check_branch
          %346 = sbr.rel (%p344) target = $region20
        $region19: #{tpu_custom_call.1} parent=11 // pred_region
          _
        $region20: #{tpu_custom_call.1} parent=11 // pred_fallthru
          _
        // Predicated region
        $region21: #{tpu_custom_call.1} parent=11 // pred_check
          %p347 = pneg %p111
        $region22: #{tpu_custom_call.1} parent=11 // pred_check_branch
          %349 = sbr.rel (%p347) target = $region24
        $region23: #{tpu_custom_call.1} parent=11 // pred_region
          _
        $region24: #{tpu_custom_call.1} parent=11 // pred_fallthru
          _
        // Predicated region
        $region25: #{tpu_custom_call.1} parent=11 // pred_check
          %p350 = pneg %p132
        $region26: #{tpu_custom_call.1} parent=11 // pred_check_branch
          %352 = sbr.rel (%p350) target = $region28
        $region27: #{tpu_custom_call.1} parent=11 // pred_region
          _
        $region28: #{tpu_custom_call.1} parent=11 // pred_fallthru
          _
        // Predicated region
        $region29: #{tpu_custom_call.1} parent=11 // pred_check
          %p353 = pneg %p153
        $region30: #{tpu_custom_call.1} parent=11 // pred_check_branch
          %355 = sbr.rel (%p353) target = $region32
        $region31: #{tpu_custom_call.1} parent=11 // pred_region
          _
        $region32: #{tpu_custom_call.1} parent=11 // pred_fallthru
          _
        // Predicated region
        $region33: #{tpu_custom_call.1} parent=11 // pred_check
          %p356 = pneg %p174
        $region34: #{tpu_custom_call.1} parent=11 // pred_check_branch
          %358 = sbr.rel (%p356) target = $region36
        $region35: #{tpu_custom_call.1} parent=11 // pred_region
          _
        $region36: #{tpu_custom_call.1} parent=11 // pred_fallthru
          _
        // Predicated region
        $region37: #{tpu_custom_call.1} parent=11 // pred_check
          %p359 = pneg %p195
        $region38: #{tpu_custom_call.1} parent=11 // pred_check_branch
          %361 = sbr.rel (%p359) target = $region40
        $region39: #{tpu_custom_call.1} parent=11 // pred_region
          _
        $region40: #{tpu_custom_call.1} parent=11 // pred_fallthru
          _
        // Predicated region
        $region41: #{tpu_custom_call.1} parent=11 // pred_check
          %p362 = pneg %p216
        $region42: #{tpu_custom_call.1} parent=11 // pred_check_branch
          %364 = sbr.rel (%p362) target = $region44
        $region43: #{tpu_custom_call.1} parent=11 // pred_region
          _
        $region44: #{tpu_custom_call.1} parent=11 // pred_fallthru
          _
        // Predicated region
        $region45: #{tpu_custom_call.1} parent=11 // pred_check
          %p365 = pneg %p237
        $region46: #{tpu_custom_call.1} parent=11 // pred_check_branch
          %367 = sbr.rel (%p365) target = $region48
        $region47: #{tpu_custom_call.1} parent=11 // pred_region
          _
        $region48: #{tpu_custom_call.1} parent=11 // pred_fallthru
          _
        // Predicated region
        $region49: #{tpu_custom_call.1} parent=11 // pred_check
          %p368 = pneg %p258
        $region50: #{tpu_custom_call.1} parent=11 // pred_check_branch
          %370 = sbr.rel (%p368) target = $region52
        $region51: #{tpu_custom_call.1} parent=11 // pred_region
          _
        $region52: #{tpu_custom_call.1} parent=11 // pred_fallthru
          _
        // Predicated region
        $region53: #{tpu_custom_call.1} parent=11 // pred_check
          %p371 = pneg %p279
        $region54: #{tpu_custom_call.1} parent=11 // pred_check_branch
          %373 = sbr.rel (%p371) target = $region56
        $region55: #{tpu_custom_call.1} parent=11 // pred_region
          _
        $region56: #{tpu_custom_call.1} parent=11 // pred_fallthru
          _
        // Predicated region
        $region57: #{tpu_custom_call.1} parent=11 // pred_check
          %p374 = pneg %p300
        $region58: #{tpu_custom_call.1} parent=11 // pred_check_branch
          %376 = sbr.rel (%p374) target = $region60
        $region59: #{tpu_custom_call.1} parent=11 // pred_region
          _
        $region60: #{tpu_custom_call.1} parent=11 // pred_fallthru
          _
      $region12: #{tpu_custom_call.1} parent=5 // pred_fallthru
        _
      %p377 = scmp.lt.s32.totalorder %s22, 2
      // Predicated region
      $region61: #{tpu_custom_call.1} parent=5 // pred_check
        %p378 = pneg %p377
      $region62: #{tpu_custom_call.1} parent=5 // pred_check_branch
        %380 = sbr.rel (%p378) target = $region64
      $region63: #{tpu_custom_call.1} parent=5 // pred_region
        // Predicated region
        $region65: #{tpu_custom_call.1} parent=63 // pred_check
          %p381 = pneg %p42
        $region66: #{tpu_custom_call.1} parent=63 // pred_check_branch
          %383 = sbr.rel (%p381) target = $region68
        $region67: #{tpu_custom_call.1} parent=63 // pred_region
          %p384 = scmp.lt.s32.totalorder %s22, 1
          %s385 = scalar_select %p384, %s22, 1
          %s386 = smul.addr %s385, 8
          %s387 = scalar_lea.vmem %s0, %s386
        $region68: #{tpu_custom_call.1} parent=63 // pred_fallthru
          _
      $region64: #{tpu_custom_call.1} parent=5 // pred_fallthru
        _
      %p388 = scmp.le.s32.totalorder 1, %s22
      %p389 = scmp.lt.s32.totalorder %s22, 3
      %p390 = pnand %p388, %p389
      %p391 = pneg %p390
      // Predicated region
      $region69: #{tpu_custom_call.1} parent=5 // pred_check
        _
      $region70: #{tpu_custom_call.1} parent=5 // pred_check_branch
        %393 = sbr.rel (%p390) target = $region72
      $region71: #{tpu_custom_call.1} parent=5 // pred_region
        %s394 = ssub.s32 %s22, 1
        %p395 = scmp.lt.s32.totalorder %s27, 1
        %s396 = scalar_select %p395, %s27, 1
        %s397 = smul.addr %s396, 8
        %s398 = scalar_lea.vmem %s0, %s397
        %p399 = pneg %p48
        %p400 = pneg %p45
        %p401 = pneg %p69
        %p402 = pneg %p66
        %p403 = pneg %p90
        %p404 = pneg %p87
        %p405 = pneg %p111
        %p406 = pneg %p108
        %p407 = pneg %p132
        %p408 = pneg %p129
        %p409 = pneg %p153
        %p410 = pneg %p150
        %p411 = pneg %p174
        %p412 = pneg %p171
        %p413 = pneg %p195
        %p414 = pneg %p192
        %p415 = pneg %p216
        %p416 = pneg %p213
        %p417 = pneg %p237
        %p418 = pneg %p234
        %p419 = pneg %p258
        %p420 = pneg %p255
        %p421 = pneg %p279
        %p422 = pneg %p276
        %p423 = pneg %p300
        %p424 = pneg %p297
        %p425 = pneg %p326
        %p426 = pneg %p323
        %s427 = sand.u32 %s313, 1
        %s428 = scalar_lea.sflag [#allocation3], %s427
        %s429 = sand.u32 %s313, 1
        %s430 = smul.addr %s429, 8
        %s431 = scalar_lea.vmem [#allocation2], %s430
        %p432 = scmp.lt.s32.totalorder %s27, 1
        %s433 = scalar_select %p432, %s27, 1
        %s434 = smul.addr %s433, 8
        %s435 = scalar_lea.vmem %s0, %s434
        %v437 = vld [vmem:[%s435] sm:$0xff]
        %v438 = vld [vmem:[%s5] sm:$0x1]
        %v439 = vld [vmem:[%s6] sm:$0x1]
        %vm440 = vcmask 261120
        %v441 = vsel %vm440, %v437, 0.0
        %442 = vadd.xlane.f32.xlu0 %v441
        %v443 = vpop.xlane.xlu0 %442
        %v444 = vrcp.pop 32.0
        %v445 = vmul.f32 %v443, %v444
        %v446 = vsub.f32 %v437, %v445
        %v447 = vmul.f32 %v446, %v446
        %v448 = vsel %vm440, %v447, 0.0
        %449 = vadd.xlane.f32.xlu0 %v448
        %v450 = vpop.xlane.xlu0 %449
        %v451 = vmul.f32 %v450, %v444
        %v452 = vadd.f32 %v451, 1e-05
        %v453 = vrsqrt.pop %v452
        %v454 = vmul.f32 %v446, %v453
        %v456 = vlaneseq
        %v457 = vshrl.u32 %v456, 7
        %v458 = vsub.s32 0, %v457
        %v459 = vrot.slane %v438, %v458
        %v461 = vmul.f32 %v454, %v459
        %v463 = vlaneseq
        %v464 = vshrl.u32 %v463, 7
        %v465 = vsub.s32 0, %v464
        %v466 = vrot.slane %v439, %v465
        %v468 = vadd.f32 %v461, %v466
        %v469 = vpack.c.bf16 %v468, %v468
        %v470 = vld [vmem:[%s1] sm:$0xf]
        %v471 = vld [vmem:[%s1 + $0x4] sm:$0xf]
        %v472 = vld [vmem:[%s1 + $0x8] sm:$0xf]
        %v473 = vld [vmem:[%s1 + $0xc] sm:$0xf]
        %v474 = vld [vmem:[%s2] sm:$0x1]
        %v476 = vlaneseq
        %v477 = vshrl.u32 %v476, 7
        %v478 = vsub.s32 0, %v477
        %v479 = vrot.slane %v474, %v478
        %v485 = vunpack.c.l.b16 %v470
        %v486 = vunpack.c.l.b16 %v471
        %v487 = vunpack.c.l.b16 %v472
        %v488 = vunpack.c.l.b16 %v473
        %v489 = vpack.c.b16 %v486, %v485
        %v490 = vpack.c.b16 %v488, %v487
        %v494 = vsel %vm440, %v469, 0
        %496 = vmatprep.subr.bf16.mxu0 0
        %497 = vmatpush1.bf16.msra.mxu0 0
        %498 = vmatprep.subr.bf16.mxu0 0
        %499 = vmatpush1.bf16.msra.mxu0 0
        %500 = vmatprep.subr.bf16.mxu0 0
        %501 = vmatpush1.bf16.msra.mxu0 0
        %502 = vmatprep.subr.bf16.mxu0 0
        %503 = vmatpush1.bf16.msra.mxu0 0
        %504 = vmatprep.subr.bf16.mxu0 0
        %505 = vmatpush1.bf16.msra.mxu0 0
        %506 = vmatprep.subr.bf16.mxu0 0
        %507 = vmatpush1.bf16.msra.mxu0 0
        %508 = vmatprep.subr.bf16.mxu0 0
        %509 = vmatpush1.bf16.msra.mxu0 %v490
        %510 = vmatprep.subr.bf16.mxu0 0
        %511 = vmatpush1.bf16.msra.mxu0 %v489
        %512 = vmatprep.subr.bf16.mxu0 0
        %513 = vmatpush2.bf16.msra.mxu0 0
        %514 = vmatprep.subr.bf16.mxu0 0
        %515 = vmatpush2.bf16.msra.mxu0 0
        %516 = vmatprep.subr.bf16.mxu0 0
        %517 = vmatpush2.bf16.msra.mxu0 0
        %518 = vmatprep.subr.bf16.mxu0 0
        %519 = vmatpush2.bf16.msra.mxu0 0
        %520 = vmatprep.subr.bf16.mxu0 0
        %521 = vmatpush2.bf16.msra.mxu0 0
        %522 = vmatprep.subr.bf16.mxu0 0
        %523 = vmatpush2.bf16.msra.mxu0 0
        %524 = vmatprep.subr.bf16.mxu0 0
        %525 = vmatpush2.bf16.msra.mxu0 0
        %526 = vmatprep.subr.bf16.mxu0 0
        %527 = vmatpush2.bf16.msra.mxu0 0
        %528 = vmatprep.mubr.bf16.mxu0 0
        %529 = vmatmul.mubr.bf16.gmra.mxu0 %v494
        %v530 = vpop.f32.mrf.mxu0
        %v531 = vadd.f32 %v479, %v530
        %v532 = vpop.f32.mrf.mxu0
        %v533 = vpop.f32.mrf.mxu0
        %v534 = vpop.f32.mrf.mxu0
        %535 = vdwg.mxu0
        %537 = vrot.lane.b32.xlu0 %v531, 120
        %v538 = vpop.permute.xlu0 %537
        %540 = vrot.lane.b32.xlu0 %v531, 112
        %v541 = vpop.permute.xlu0 %540
        %543 = vrot.lane.b32.xlu0 %v531, 104
        %v544 = vpop.permute.xlu0 %543
        %v546 = vcombine.low %v531, %v541
        %v547 = vcombine.high %v531, %v541
        %v549 = vunpack.c.l.s4 1983009808
        %v550 = vunpack.c.0.s8 %v549
        %v551 = vlaneseq
        %v552 = vshrl.u32 %v551, 7
        %v553 = vsub.s32 %v550, %v552
        %v554 = vrot.slane %v546, %v553
        %v556 = vunpack.c.l.s4 1983009808
        %v557 = vunpack.c.0.s8 %v556
        %v558 = vlaneseq
        %v559 = vshrl.u32 %v558, 7
        %v560 = vsub.s32 %v557, %v559
        %v561 = vrot.slane %v547, %v560
        %v562 = vcombine.low %v538, %v544
        %v563 = vcombine.high %v538, %v544
        %v565 = vunpack.c.l.s4 1983009808
        %v566 = vunpack.c.0.s8 %v565
        %v567 = vlaneseq
        %v568 = vshrl.u32 %v567, 7
        %v569 = vsub.s32 %v566, %v568
        %v570 = vrot.slane %v562, %v569
        %v572 = vunpack.c.l.s4 1983009808
        %v573 = vunpack.c.0.s8 %v572
        %v574 = vlaneseq
        %v575 = vshrl.u32 %v574, 7
        %v576 = vsub.s32 %v573, %v575
        %v577 = vrot.slane %v563, %v576
        %v578 = vcombine.low %v554, %v570
        %v579 = vcombine.high %v554, %v570
        %v581 = vunpack.c.l.s4 1934713408
        %v582 = vunpack.c.0.s8 %v581
        %v583 = vlaneseq
        %v584 = vshrl.u32 %v583, 7
        %v585 = vsub.s32 %v582, %v584
        %v586 = vrot.slane %v578, %v585
        %v588 = vunpack.c.l.s4 1934713408
        %v589 = vunpack.c.0.s8 %v588
        %v590 = vlaneseq
        %v591 = vshrl.u32 %v590, 7
        %v592 = vsub.s32 %v589, %v591
        %v593 = vrot.slane %v579, %v592
        %v594 = vcombine.low %v561, %v577
        %v595 = vcombine.high %v561, %v577
        %v597 = vunpack.c.l.s4 1934713408
        %v598 = vunpack.c.0.s8 %v597
        %v599 = vlaneseq
        %v600 = vshrl.u32 %v599, 7
        %v601 = vsub.s32 %v598, %v600
        %v602 = vrot.slane %v594, %v601
        %v604 = vunpack.c.l.s4 1934713408
        %v605 = vunpack.c.0.s8 %v604
        %v606 = vlaneseq
        %v607 = vshrl.u32 %v606, 7
        %v608 = vsub.s32 %v605, %v607
        %v609 = vrot.slane %v595, %v608
        %v610 = vcombine.high %v586, 0.0
        %v611 = vcombine.high %v593, 0.0
        %v612 = vcombine.high %v602, 0.0
        %v613 = vcombine.high %v609, 0.0
        %v614 = vcombine.low %v586, %v593
        %v616 = vunpack.c.l.s4 1983009808
        %v617 = vunpack.c.0.s8 %v616
        %v618 = vlaneseq
        %v619 = vshrl.u32 %v618, 7
        %v620 = vsub.s32 %v617, %v619
        %v621 = vrot.slane %v614, %v620
        %v622 = vcombine.low %v610, %v611
        %v624 = vunpack.c.l.s4 1983009808
        %v625 = vunpack.c.0.s8 %v624
        %v626 = vlaneseq
        %v627 = vshrl.u32 %v626, 7
        %v628 = vsub.s32 %v625, %v627
        %v629 = vrot.slane %v622, %v628
        %v630 = vcombine.low %v602, %v609
        %v632 = vunpack.c.l.s4 1983009808
        %v633 = vunpack.c.0.s8 %v632
        %v634 = vlaneseq
        %v635 = vshrl.u32 %v634, 7
        %v636 = vsub.s32 %v633, %v635
        %v637 = vrot.slane %v630, %v636
        %v638 = vcombine.low %v612, %v613
        %v640 = vunpack.c.l.s4 1983009808
        %v641 = vunpack.c.0.s8 %v640
        %v642 = vlaneseq
        %v643 = vshrl.u32 %v642, 7
        %v644 = vsub.s32 %v641, %v643
        %v645 = vrot.slane %v638, %v644
        %v646 = vcombine.low %v621, %v629
        %v647 = vcombine.high %v621, %v629
        %v649 = vunpack.c.l.s4 1934713408
        %v650 = vunpack.c.0.s8 %v649
        %v651 = vlaneseq
        %v652 = vshrl.u32 %v651, 7
        %v653 = vsub.s32 %v650, %v652
        %v654 = vrot.slane %v646, %v653
        %v656 = vunpack.c.l.s4 1934713408
        %v657 = vunpack.c.0.s8 %v656
        %v658 = vlaneseq
        %v659 = vshrl.u32 %v658, 7
        %v660 = vsub.s32 %v657, %v659
        %v661 = vrot.slane %v647, %v660
        %v662 = vcombine.low %v637, %v645
        %v663 = vcombine.high %v637, %v645
        %v665 = vunpack.c.l.s4 1934713408
        %v666 = vunpack.c.0.s8 %v665
        %v667 = vlaneseq
        %v668 = vshrl.u32 %v667, 7
        %v669 = vsub.s32 %v666, %v668
        %v670 = vrot.slane %v662, %v669
        %v672 = vunpack.c.l.s4 1934713408
        %v673 = vunpack.c.0.s8 %v672
        %v674 = vlaneseq
        %v675 = vshrl.u32 %v674, 7
        %v676 = vsub.s32 %v673, %v675
        %v677 = vrot.slane %v663, %v676
        %v678 = vcombine.low %v654, %v670
        %v679 = vcombine.high %v654, %v670
        %v680 = vcombine.low %v661, %v677
        %v681 = vcombine.high %v661, %v677
        %v682 = vpack.c.bf16 %v678, %v678
        %v683 = vpack.c.bf16 %v679, %v679
        %v684 = vpack.c.bf16 %v680, %v680
        %v685 = vpack.c.bf16 %v681, %v681
        %686 = vrot.lane.b32.xlu0 %v531, 96
        %v687 = vpop.permute.xlu0 %686
        %688 = vrot.lane.b32.xlu0 %v538, 96
        %v689 = vpop.permute.xlu0 %688
        %690 = vrot.lane.b32.xlu0 %v541, 96
        %v691 = vpop.permute.xlu0 %690
        %692 = vrot.lane.b32.xlu0 %v544, 96
        %v693 = vpop.permute.xlu0 %692
        %v698 = vcombine.low %v687, %v691
        %v699 = vcombine.high %v687, %v691
        %v701 = vunpack.c.l.s4 1983009808
        %v702 = vunpack.c.0.s8 %v701
        %v703 = vlaneseq
        %v704 = vshrl.u32 %v703, 7
        %v705 = vsub.s32 %v702, %v704
        %v706 = vrot.slane %v698, %v705
        %v708 = vunpack.c.l.s4 1983009808
        %v709 = vunpack.c.0.s8 %v708
        %v710 = vlaneseq
        %v711 = vshrl.u32 %v710, 7
        %v712 = vsub.s32 %v709, %v711
        %v713 = vrot.slane %v699, %v712
        %v714 = vcombine.low %v689, %v693
        %v715 = vcombine.high %v689, %v693
        %v717 = vunpack.c.l.s4 1983009808
        %v718 = vunpack.c.0.s8 %v717
        %v719 = vlaneseq
        %v720 = vshrl.u32 %v719, 7
        %v721 = vsub.s32 %v718, %v720
        %v722 = vrot.slane %v714, %v721
        %v724 = vunpack.c.l.s4 1983009808
        %v725 = vunpack.c.0.s8 %v724
        %v726 = vlaneseq
        %v727 = vshrl.u32 %v726, 7
        %v728 = vsub.s32 %v725, %v727
        %v729 = vrot.slane %v715, %v728
        %v730 = vcombine.low %v706, %v722
        %v731 = vcombine.high %v706, %v722
        %v733 = vunpack.c.l.s4 1934713408
        %v734 = vunpack.c.0.s8 %v733
        %v735 = vlaneseq
        %v736 = vshrl.u32 %v735, 7
        %v737 = vsub.s32 %v734, %v736
        %v738 = vrot.slane %v730, %v737
        %v740 = vunpack.c.l.s4 1934713408
        %v741 = vunpack.c.0.s8 %v740
        %v742 = vlaneseq
        %v743 = vshrl.u32 %v742, 7
        %v744 = vsub.s32 %v741, %v743
        %v745 = vrot.slane %v731, %v744
        %v746 = vcombine.low %v713, %v729
        %v747 = vcombine.high %v713, %v729
        %v749 = vunpack.c.l.s4 1934713408
        %v750 = vunpack.c.0.s8 %v749
        %v751 = vlaneseq
        %v752 = vshrl.u32 %v751, 7
        %v753 = vsub.s32 %v750, %v752
        %v754 = vrot.slane %v746, %v753
        %v756 = vunpack.c.l.s4 1934713408
        %v757 = vunpack.c.0.s8 %v756
        %v758 = vlaneseq
        %v759 = vshrl.u32 %v758, 7
        %v760 = vsub.s32 %v757, %v759
        %v761 = vrot.slane %v747, %v760
        %v762 = vcombine.high %v738, 0.0
        %v763 = vcombine.high %v745, 0.0
        %v764 = vcombine.high %v754, 0.0
        %v765 = vcombine.high %v761, 0.0
        %v766 = vcombine.low %v738, %v745
        %v768 = vunpack.c.l.s4 1983009808
        %v769 = vunpack.c.0.s8 %v768
        %v770 = vlaneseq
        %v771 = vshrl.u32 %v770, 7
        %v772 = vsub.s32 %v769, %v771
        %v773 = vrot.slane %v766, %v772
        %v774 = vcombine.low %v762, %v763
        %v776 = vunpack.c.l.s4 1983009808
        %v777 = vunpack.c.0.s8 %v776
        %v778 = vlaneseq
        %v779 = vshrl.u32 %v778, 7
        %v780 = vsub.s32 %v777, %v779
        %v781 = vrot.slane %v774, %v780
        %v782 = vcombine.low %v754, %v761
        %v784 = vunpack.c.l.s4 1983009808
        %v785 = vunpack.c.0.s8 %v784
        %v786 = vlaneseq
        %v787 = vshrl.u32 %v786, 7
        %v788 = vsub.s32 %v785, %v787
        %v789 = vrot.slane %v782, %v788
        %v790 = vcombine.low %v764, %v765
        %v792 = vunpack.c.l.s4 1983009808
        %v793 = vunpack.c.0.s8 %v792
        %v794 = vlaneseq
        %v795 = vshrl.u32 %v794, 7
        %v796 = vsub.s32 %v793, %v795
        %v797 = vrot.slane %v790, %v796
        %v798 = vcombine.low %v773, %v781
        %v799 = vcombine.high %v773, %v781
        %v801 = vunpack.c.l.s4 1934713408
        %v802 = vunpack.c.0.s8 %v801
        %v803 = vlaneseq
        %v804 = vshrl.u32 %v803, 7
        %v805 = vsub.s32 %v802, %v804
        %v806 = vrot.slane %v798, %v805
        %v808 = vunpack.c.l.s4 1934713408
        %v809 = vunpack.c.0.s8 %v808
        %v810 = vlaneseq
        %v811 = vshrl.u32 %v810, 7
        %v812 = vsub.s32 %v809, %v811
        %v813 = vrot.slane %v799, %v812
        %v814 = vcombine.low %v789, %v797
        %v815 = vcombine.high %v789, %v797
        %v817 = vunpack.c.l.s4 1934713408
        %v818 = vunpack.c.0.s8 %v817
        %v819 = vlaneseq
        %v820 = vshrl.u32 %v819, 7
        %v821 = vsub.s32 %v818, %v820
        %v822 = vrot.slane %v814, %v821
        %v824 = vunpack.c.l.s4 1934713408
        %v825 = vunpack.c.0.s8 %v824
        %v826 = vlaneseq
        %v827 = vshrl.u32 %v826, 7
        %v828 = vsub.s32 %v825, %v827
        %v829 = vrot.slane %v815, %v828
        %v830 = vcombine.low %v806, %v822
        %v831 = vcombine.high %v806, %v822
        %v832 = vcombine.low %v813, %v829
        %v833 = vcombine.high %v813, %v829
        %v834 = vpack.c.bf16 %v830, %v830
        %v835 = vpack.c.bf16 %v831, %v831
        %v836 = vpack.c.bf16 %v832, %v832
        %v837 = vpack.c.bf16 %v833, %v833
        %838 = vrot.lane.b32.xlu0 %v531, 64
        %v839 = vpop.permute.xlu0 %838
        %840 = vrot.lane.b32.xlu0 %v538, 64
        %v841 = vpop.permute.xlu0 %840
        %842 = vrot.lane.b32.xlu0 %v541, 64
        %v843 = vpop.permute.xlu0 %842
        %844 = vrot.lane.b32.xlu0 %v544, 64
        %v845 = vpop.permute.xlu0 %844
        %v850 = vcombine.low %v839, %v843
        %v851 = vcombine.high %v839, %v843
        %v853 = vunpack.c.l.s4 1983009808
        %v854 = vunpack.c.0.s8 %v853
        %v855 = vlaneseq
        %v856 = vshrl.u32 %v855, 7
        %v857 = vsub.s32 %v854, %v856
        %v858 = vrot.slane %v850, %v857
        %v860 = vunpack.c.l.s4 1983009808
        %v861 = vunpack.c.0.s8 %v860
        %v862 = vlaneseq
        %v863 = vshrl.u32 %v862, 7
        %v864 = vsub.s32 %v861, %v863
        %v865 = vrot.slane %v851, %v864
        %v866 = vcombine.low %v841, %v845
        %v867 = vcombine.high %v841, %v845
        %v869 = vunpack.c.l.s4 1983009808
        %v870 = vunpack.c.0.s8 %v869
        %v871 = vlaneseq
        %v872 = vshrl.u32 %v871, 7
        %v873 = vsub.s32 %v870, %v872
        %v874 = vrot.slane %v866, %v873
        %v876 = vunpack.c.l.s4 1983009808
        %v877 = vunpack.c.0.s8 %v876
        %v878 = vlaneseq
        %v879 = vshrl.u32 %v878, 7
        %v880 = vsub.s32 %v877, %v879
        %v881 = vrot.slane %v867, %v880
        %v882 = vcombine.low %v858, %v874
        %v883 = vcombine.high %v858, %v874
        %v885 = vunpack.c.l.s4 1934713408
        %v886 = vunpack.c.0.s8 %v885
        %v887 = vlaneseq
        %v888 = vshrl.u32 %v887, 7
        %v889 = vsub.s32 %v886, %v888
        %v890 = vrot.slane %v882, %v889
        %v892 = vunpack.c.l.s4 1934713408
        %v893 = vunpack.c.0.s8 %v892
        %v894 = vlaneseq
        %v895 = vshrl.u32 %v894, 7
        %v896 = vsub.s32 %v893, %v895
        %v897 = vrot.slane %v883, %v896
        %v898 = vcombine.low %v865, %v881
        %v899 = vcombine.high %v865, %v881
        %v901 = vunpack.c.l.s4 1934713408
        %v902 = vunpack.c.0.s8 %v901
        %v903 = vlaneseq
        %v904 = vshrl.u32 %v903, 7
        %v905 = vsub.s32 %v902, %v904
        %v906 = vrot.slane %v898, %v905
        %v908 = vunpack.c.l.s4 1934713408
        %v909 = vunpack.c.0.s8 %v908
        %v910 = vlaneseq
        %v911 = vshrl.u32 %v910, 7
        %v912 = vsub.s32 %v909, %v911
        %v913 = vrot.slane %v899, %v912
        %v914 = vcombine.high %v890, 0.0
        %v915 = vcombine.high %v897, 0.0
        %v916 = vcombine.high %v906, 0.0
        %v917 = vcombine.high %v913, 0.0
        %v918 = vcombine.low %v890, %v897
        %v920 = vunpack.c.l.s4 1983009808
        %v921 = vunpack.c.0.s8 %v920
        %v922 = vlaneseq
        %v923 = vshrl.u32 %v922, 7
        %v924 = vsub.s32 %v921, %v923
        %v925 = vrot.slane %v918, %v924
        %v926 = vcombine.low %v914, %v915
        %v928 = vunpack.c.l.s4 1983009808
        %v929 = vunpack.c.0.s8 %v928
        %v930 = vlaneseq
        %v931 = vshrl.u32 %v930, 7
        %v932 = vsub.s32 %v929, %v931
        %v933 = vrot.slane %v926, %v932
        %v934 = vcombine.low %v906, %v913
        %v936 = vunpack.c.l.s4 1983009808
        %v937 = vunpack.c.0.s8 %v936
        %v938 = vlaneseq
        %v939 = vshrl.u32 %v938, 7
        %v940 = vsub.s32 %v937, %v939
        %v941 = vrot.slane %v934, %v940
        %v942 = vcombine.low %v916, %v917
        %v944 = vunpack.c.l.s4 1983009808
        %v945 = vunpack.c.0.s8 %v944
        %v946 = vlaneseq
        %v947 = vshrl.u32 %v946, 7
        %v948 = vsub.s32 %v945, %v947
        %v949 = vrot.slane %v942, %v948
        %v950 = vcombine.low %v925, %v933
        %v951 = vcombine.high %v925, %v933
        %v953 = vunpack.c.l.s4 1934713408
        %v954 = vunpack.c.0.s8 %v953
        %v955 = vlaneseq
        %v956 = vshrl.u32 %v955, 7
        %v957 = vsub.s32 %v954, %v956
        %v958 = vrot.slane %v950, %v957
        %v960 = vunpack.c.l.s4 1934713408
        %v961 = vunpack.c.0.s8 %v960
        %v962 = vlaneseq
        %v963 = vshrl.u32 %v962, 7
        %v964 = vsub.s32 %v961, %v963
        %v965 = vrot.slane %v951, %v964
        %v966 = vcombine.low %v941, %v949
        %v967 = vcombine.high %v941, %v949
        %v969 = vunpack.c.l.s4 1934713408
        %v970 = vunpack.c.0.s8 %v969
        %v971 = vlaneseq
        %v972 = vshrl.u32 %v971, 7
        %v973 = vsub.s32 %v970, %v972
        %v974 = vrot.slane %v966, %v973
        %v976 = vunpack.c.l.s4 1934713408
        %v977 = vunpack.c.0.s8 %v976
        %v978 = vlaneseq
        %v979 = vshrl.u32 %v978, 7
        %v980 = vsub.s32 %v977, %v979
        %v981 = vrot.slane %v967, %v980
        %v982 = vcombine.low %v958, %v974
        %v983 = vcombine.high %v958, %v974
        %v984 = vcombine.low %v965, %v981
        %v985 = vcombine.high %v965, %v981
        %v986 = vpack.c.bf16 %v982, %v982
        %v987 = vpack.c.bf16 %v983, %v983
        %v988 = vpack.c.bf16 %v984, %v984
        %v989 = vpack.c.bf16 %v985, %v985
        %vm990 = vcmask 64512
        %v992 = vsel %vm990, %v682, 0
        %v995 = vsel %vm990, %v834, 0
        %997 = vmatprep.subr.bf16.mxu0 0
        %998 = vmatpush1.bf16.xpose.msra.mxu0 0
        %999 = vmatprep.subr.bf16.mxu0 0
        %1000 = vmatpush1.bf16.xpose.msra.mxu0 0
        %1001 = vmatprep.subr.bf16.mxu0 0
        %1002 = vmatpush1.bf16.xpose.msra.mxu0 0
        %1003 = vmatprep.subr.bf16.mxu0 0
        %1004 = vmatpush1.bf16.xpose.msra.mxu0 0
        %1005 = vmatprep.subr.bf16.mxu0 0
        %1006 = vmatpush1.bf16.xpose.msra.mxu0 0
        %1007 = vmatprep.subr.bf16.mxu0 0
        %1008 = vmatpush1.bf16.xpose.msra.mxu0 0
        %1009 = vmatprep.subr.bf16.mxu0 0
        %1010 = vmatpush1.bf16.xpose.msra.mxu0 0
        %1011 = vmatprep.subr.bf16.mxu0 0
        %1012 = vmatpush1.bf16.xpose.msra.mxu0 %v995
        %1013 = vmatprep.subr.bf16.mxu0 0
        %1014 = vmatpush2.bf16.xpose.msra.mxu0 0
        %1015 = vmatprep.subr.bf16.mxu0 0
        %1016 = vmatpush2.bf16.xpose.msra.mxu0 0
        %1017 = vmatprep.subr.bf16.mxu0 0
        %1018 = vmatpush2.bf16.xpose.msra.mxu0 0
        %1019 = vmatprep.subr.bf16.mxu0 0
        %1020 = vmatpush2.bf16.xpose.msra.mxu0 0
        %1021 = vmatprep.subr.bf16.mxu0 0
        %1022 = vmatpush2.bf16.xpose.msra.mxu0 0
        %1023 = vmatprep.subr.bf16.mxu0 0
        %1024 = vmatpush2.bf16.xpose.msra.mxu0 0
        %1025 = vmatprep.subr.bf16.mxu0 0
        %1026 = vmatpush2.bf16.xpose.msra.mxu0 0
        %1027 = vmatprep.subr.bf16.mxu0 0
        %1028 = vmatpush2.bf16.xpose.msra.mxu0 0
        %1029 = vmatprep.mubr.bf16.mxu0 0
        %1030 = vmatmul.mubr.bf16.gmra.mxu0 %v992
        %v1031 = vpop.f32.mrf.mxu0
        %v1032 = vadd.f32 0.0, %v1031
        %v1033 = vpop.f32.mrf.mxu0
        %v1034 = vpop.f32.mrf.mxu0
        %v1035 = vpop.f32.mrf.mxu0
        %1036 = vdwg.mxu0
        %v1038 = vsel %vm990, %v683, 0
        %v1041 = vsel %vm990, %v835, 0
        %1043 = vmatprep.subr.bf16.mxu0 0
        %1044 = vmatpush1.bf16.xpose.msra.mxu0 0
        %1045 = vmatprep.subr.bf16.mxu0 0
        %1046 = vmatpush1.bf16.xpose.msra.mxu0 0
        %1047 = vmatprep.subr.bf16.mxu0 0
        %1048 = vmatpush1.bf16.xpose.msra.mxu0 0
        %1049 = vmatprep.subr.bf16.mxu0 0
        %1050 = vmatpush1.bf16.xpose.msra.mxu0 0
        %1051 = vmatprep.subr.bf16.mxu0 0
        %1052 = vmatpush1.bf16.xpose.msra.mxu0 0
        %1053 = vmatprep.subr.bf16.mxu0 0
        %1054 = vmatpush1.bf16.xpose.msra.mxu0 0
        %1055 = vmatprep.subr.bf16.mxu0 0
        %1056 = vmatpush1.bf16.xpose.msra.mxu0 0
        %1057 = vmatprep.subr.bf16.mxu0 0
        %1058 = vmatpush1.bf16.xpose.msra.mxu0 %v1041
        %1059 = vmatprep.subr.bf16.mxu0 0
        %1060 = vmatpush2.bf16.xpose.msra.mxu0 0
        %1061 = vmatprep.subr.bf16.mxu0 0
        %1062 = vmatpush2.bf16.xpose.msra.mxu0 0
        %1063 = vmatprep.subr.bf16.mxu0 0
        %1064 = vmatpush2.bf16.xpose.msra.mxu0 0
        %1065 = vmatprep.subr.bf16.mxu0 0
        %1066 = vmatpush2.bf16.xpose.msra.mxu0 0
        %1067 = vmatprep.subr.bf16.mxu0 0
        %1068 = vmatpush2.bf16.xpose.msra.mxu0 0
        %1069 = vmatprep.subr.bf16.mxu0 0
        %1070 = vmatpush2.bf16.xpose.msra.mxu0 0
        %1071 = vmatprep.subr.bf16.mxu0 0
        %1072 = vmatpush2.bf16.xpose.msra.mxu0 0
        %1073 = vmatprep.subr.bf16.mxu0 0
        %1074 = vmatpush2.bf16.xpose.msra.mxu0 0
        %1075 = vmatprep.mubr.bf16.mxu0 0
        %1076 = vmatmul.mubr.bf16.gmra.mxu0 %v1038
        %v1077 = vpop.f32.mrf.mxu0
        %v1078 = vadd.f32 0.0, %v1077
        %v1079 = vpop.f32.mrf.mxu0
        %v1080 = vpop.f32.mrf.mxu0
        %v1081 = vpop.f32.mrf.mxu0
        %1082 = vdwg.mxu0
        %v1084 = vsel %vm990, %v684, 0
        %v1087 = vsel %vm990, %v836, 0
        %1089 = vmatprep.subr.bf16.mxu0 0
        %1090 = vmatpush1.bf16.xpose.msra.mxu0 0
        %1091 = vmatprep.subr.bf16.mxu0 0
        %1092 = vmatpush1.bf16.xpose.msra.mxu0 0
        %1093 = vmatprep.subr.bf16.mxu0 0
        %1094 = vmatpush1.bf16.xpose.msra.mxu0 0
        %1095 = vmatprep.subr.bf16.mxu0 0
        %1096 = vmatpush1.bf16.xpose.msra.mxu0 0
        %1097 = vmatprep.subr.bf16.mxu0 0
        %1098 = vmatpush1.bf16.xpose.msra.mxu0 0
        %1099 = vmatprep.subr.bf16.mxu0 0
        %1100 = vmatpush1.bf16.xpose.msra.mxu0 0
        %1101 = vmatprep.subr.bf16.mxu0 0
        %1102 = vmatpush1.bf16.xpose.msra.mxu0 0
        %1103 = vmatprep.subr.bf16.mxu0 0
        %1104 = vmatpush1.bf16.xpose.msra.mxu0 %v1087
        %1105 = vmatprep.subr.bf16.mxu0 0
        %1106 = vmatpush2.bf16.xpose.msra.mxu0 0
        %1107 = vmatprep.subr.bf16.mxu0 0
        %1108 = vmatpush2.bf16.xpose.msra.mxu0 0
        %1109 = vmatprep.subr.bf16.mxu0 0
        %1110 = vmatpush2.bf16.xpose.msra.mxu0 0
        %1111 = vmatprep.subr.bf16.mxu0 0
        %1112 = vmatpush2.bf16.xpose.msra.mxu0 0
        %1113 = vmatprep.subr.bf16.mxu0 0
        %1114 = vmatpush2.bf16.xpose.msra.mxu0 0
        %1115 = vmatprep.subr.bf16.mxu0 0
        %1116 = vmatpush2.bf16.xpose.msra.mxu0 0
        %1117 = vmatprep.subr.bf16.mxu0 0
        %1118 = vmatpush2.bf16.xpose.msra.mxu0 0
        %1119 = vmatprep.subr.bf16.mxu0 0
        %1120 = vmatpush2.bf16.xpose.msra.mxu0 0
        %1121 = vmatprep.mubr.bf16.mxu0 0
        %1122 = vmatmul.mubr.bf16.gmra.mxu0 %v1084
        %v1123 = vpop.f32.mrf.mxu0
        %v1124 = vadd.f32 0.0, %v1123
        %v1125 = vpop.f32.mrf.mxu0
        %v1126 = vpop.f32.mrf.mxu0
        %v1127 = vpop.f32.mrf.mxu0
        %1128 = vdwg.mxu0
        %v1130 = vsel %vm990, %v685, 0
        %v1133 = vsel %vm990, %v837, 0
        %1135 = vmatprep.subr.bf16.mxu0 0
        %1136 = vmatpush1.bf16.xpose.msra.mxu0 0
        %1137 = vmatprep.subr.bf16.mxu0 0
        %1138 = vmatpush1.bf16.xpose.msra.mxu0 0
        %1139 = vmatprep.subr.bf16.mxu0 0
        %1140 = vmatpush1.bf16.xpose.msra.mxu0 0
        %1141 = vmatprep.subr.bf16.mxu0 0
        %1142 = vmatpush1.bf16.xpose.msra.mxu0 0
        %1143 = vmatprep.subr.bf16.mxu0 0
        %1144 = vmatpush1.bf16.xpose.msra.mxu0 0
        %1145 = vmatprep.subr.bf16.mxu0 0
        %1146 = vmatpush1.bf16.xpose.msra.mxu0 0
        %1147 = vmatprep.subr.bf16.mxu0 0
        %1148 = vmatpush1.bf16.xpose.msra.mxu0 0
        %1149 = vmatprep.subr.bf16.mxu0 0
        %1150 = vmatpush1.bf16.xpose.msra.mxu0 %v1133
        %1151 = vmatprep.subr.bf16.mxu0 0
        %1152 = vmatpush2.bf16.xpose.msra.mxu0 0
        %1153 = vmatprep.subr.bf16.mxu0 0
        %1154 = vmatpush2.bf16.xpose.msra.mxu0 0
        %1155 = vmatprep.subr.bf16.mxu0 0
        %1156 = vmatpush2.bf16.xpose.msra.mxu0 0
        %1157 = vmatprep.subr.bf16.mxu0 0
        %1158 = vmatpush2.bf16.xpose.msra.mxu0 0
        %1159 = vmatprep.subr.bf16.mxu0 0
        %1160 = vmatpush2.bf16.xpose.msra.mxu0 0
        %1161 = vmatprep.subr.bf16.mxu0 0
        %1162 = vmatpush2.bf16.xpose.msra.mxu0 0
        %1163 = vmatprep.subr.bf16.mxu0 0
        %1164 = vmatpush2.bf16.xpose.msra.mxu0 0
        %1165 = vmatprep.subr.bf16.mxu0 0
        %1166 = vmatpush2.bf16.xpose.msra.mxu0 0
        %1167 = vmatprep.mubr.bf16.mxu0 0
        %1168 = vmatmul.mubr.bf16.gmra.mxu0 %v1130
        %v1169 = vpop.f32.mrf.mxu0
        %v1170 = vadd.f32 0.0, %v1169
        %v1171 = vpop.f32.mrf.mxu0
        %v1172 = vpop.f32.mrf.mxu0
        %v1173 = vpop.f32.mrf.mxu0
        %1174 = vdwg.mxu0
        %v1175 = vsel %vm990, %v1032, -inf
        %1176 = vmax.xlane.f32.xlu0 %v1175
        %v1177 = vpop.xlane.xlu0 %1176
        %v1178 = vsel %vm990, %v1078, -inf
        %1179 = vmax.xlane.f32.xlu0 %v1178
        %v1180 = vpop.xlane.xlu0 %1179
        %v1181 = vsel %vm990, %v1124, -inf
        %1182 = vmax.xlane.f32.xlu0 %v1181
        %v1183 = vpop.xlane.xlu0 %1182
        %v1184 = vsel %vm990, %v1170, -inf
        %1185 = vmax.xlane.f32.xlu0 %v1184
        %v1186 = vpop.xlane.xlu0 %1185
        %v1187 = vsub.f32 %v1032, %v1177
        %v1188 = vsub.f32 %v1078, %v1180
        %v1189 = vsub.f32 %v1124, %v1183
        %v1190 = vsub.f32 %v1170, %v1186
        %v1191 = vmul.f32 %v1187, 1.442695
        %v1192 = vpow.pop %v1191
        %v1193 = vmul.f32 %v1188, 1.442695
        %v1194 = vpow.pop %v1193
        %v1195 = vmul.f32 %v1189, 1.442695
        %v1196 = vpow.pop %v1195
        %v1197 = vmul.f32 %v1190, 1.442695
        %v1198 = vpow.pop %v1197
        %v1199 = vsel %vm990, %v1192, 0.0
        %1200 = vadd.xlane.f32.xlu0 %v1199
        %v1201 = vpop.xlane.xlu0 %1200
        %v1202 = vsel %vm990, %v1194, 0.0
        %1203 = vadd.xlane.f32.xlu0 %v1202
        %v1204 = vpop.xlane.xlu0 %1203
        %v1205 = vsel %vm990, %v1196, 0.0
        %1206 = vadd.xlane.f32.xlu0 %v1205
        %v1207 = vpop.xlane.xlu0 %1206
        %v1208 = vsel %vm990, %v1198, 0.0
        %1209 = vadd.xlane.f32.xlu0 %v1208
        %v1210 = vpop.xlane.xlu0 %1209
        %v1211 = vrcp.pop %v1201
        %v1212 = vrcp.pop %v1204
        %v1213 = vrcp.pop %v1207
        %v1214 = vrcp.pop %v1210
        %v1215 = vmul.f32 %v1192, %v1211
        %v1216 = vmul.f32 %v1194, %v1212
        %v1217 = vmul.f32 %v1196, %v1213
        %v1218 = vmul.f32 %v1198, %v1214
        %v1219 = vpack.c.bf16 %v1215, %v1215
        %v1220 = vpack.c.bf16 %v1216, %v1216
        %v1221 = vpack.c.bf16 %v1217, %v1217
        %v1222 = vpack.c.bf16 %v1218, %v1218
        %v1224 = vsel %vm990, %v1219, 0
        %vm1226 = vcmask 1043456
        %v1228 = vsel %vm1226, %v986, 0
        %1230 = vmatprep.subr.bf16.mxu0 0
        %1231 = vmatpush1.bf16.msra.mxu0 0
        %1232 = vmatprep.subr.bf16.mxu0 0
        %1233 = vmatpush1.bf16.msra.mxu0 0
        %1234 = vmatprep.subr.bf16.mxu0 0
        %1235 = vmatpush1.bf16.msra.mxu0 0
        %1236 = vmatprep.subr.bf16.mxu0 0
        %1237 = vmatpush1.bf16.msra.mxu0 0
        %1238 = vmatprep.subr.bf16.mxu0 0
        %1239 = vmatpush1.bf16.msra.mxu0 0
        %1240 = vmatprep.subr.bf16.mxu0 0
        %1241 = vmatpush1.bf16.msra.mxu0 0
        %1242 = vmatprep.subr.bf16.mxu0 0
        %1243 = vmatpush1.bf16.msra.mxu0 0
        %1244 = vmatprep.subr.bf16.mxu0 0
        %1245 = vmatpush1.bf16.msra.mxu0 %v1228
        %1246 = vmatprep.subr.bf16.mxu0 0
        %1247 = vmatpush2.bf16.msra.mxu0 0
        %1248 = vmatprep.subr.bf16.mxu0 0
        %1249 = vmatpush2.bf16.msra.mxu0 0
        %1250 = vmatprep.subr.bf16.mxu0 0
        %1251 = vmatpush2.bf16.msra.mxu0 0
        %1252 = vmatprep.subr.bf16.mxu0 0
        %1253 = vmatpush2.bf16.msra.mxu0 0
        %1254 = vmatprep.subr.bf16.mxu0 0
        %1255 = vmatpush2.bf16.msra.mxu0 0
        %1256 = vmatprep.subr.bf16.mxu0 0
        %1257 = vmatpush2.bf16.msra.mxu0 0
        %1258 = vmatprep.subr.bf16.mxu0 0
        %1259 = vmatpush2.bf16.msra.mxu0 0
        %1260 = vmatprep.subr.bf16.mxu0 0
        %1261 = vmatpush2.bf16.msra.mxu0 0
        %1262 = vmatprep.mubr.bf16.mxu0 0
        %1263 = vmatmul.mubr.bf16.gmra.mxu0 %v1224
        %v1264 = vpop.f32.mrf.mxu0
        %v1265 = vadd.f32 0.0, %v1264
        %v1266 = vpop.f32.mrf.mxu0
        %v1267 = vpop.f32.mrf.mxu0
        %v1268 = vpop.f32.mrf.mxu0
        %1269 = vdwg.mxu0
        %v1271 = vsel %vm990, %v1220, 0
        %v1274 = vsel %vm1226, %v987, 0
        %1276 = vmatprep.subr.bf16.mxu0 0
        %1277 = vmatpush1.bf16.msra.mxu0 0
        %1278 = vmatprep.subr.bf16.mxu0 0
        %1279 = vmatpush1.bf16.msra.mxu0 0
        %1280 = vmatprep.subr.bf16.mxu0 0
        %1281 = vmatpush1.bf16.msra.mxu0 0
        %1282 = vmatprep.subr.bf16.mxu0 0
        %1283 = vmatpush1.bf16.msra.mxu0 0
        %1284 = vmatprep.subr.bf16.mxu0 0
        %1285 = vmatpush1.bf16.msra.mxu0 0
        %1286 = vmatprep.subr.bf16.mxu0 0
        %1287 = vmatpush1.bf16.msra.mxu0 0
        %1288 = vmatprep.subr.bf16.mxu0 0
        %1289 = vmatpush1.bf16.msra.mxu0 0
        %1290 = vmatprep.subr.bf16.mxu0 0
        %1291 = vmatpush1.bf16.msra.mxu0 %v1274
        %1292 = vmatprep.subr.bf16.mxu0 0
        %1293 = vmatpush2.bf16.msra.mxu0 0
        %1294 = vmatprep.subr.bf16.mxu0 0
        %1295 = vmatpush2.bf16.msra.mxu0 0
        %1296 = vmatprep.subr.bf16.mxu0 0
        %1297 = vmatpush2.bf16.msra.mxu0 0
        %1298 = vmatprep.subr.bf16.mxu0 0
        %1299 = vmatpush2.bf16.msra.mxu0 0
        %1300 = vmatprep.subr.bf16.mxu0 0
        %1301 = vmatpush2.bf16.msra.mxu0 0
        %1302 = vmatprep.subr.bf16.mxu0 0
        %1303 = vmatpush2.bf16.msra.mxu0 0
        %1304 = vmatprep.subr.bf16.mxu0 0
        %1305 = vmatpush2.bf16.msra.mxu0 0
        %1306 = vmatprep.subr.bf16.mxu0 0
        %1307 = vmatpush2.bf16.msra.mxu0 0
        %1308 = vmatprep.mubr.bf16.mxu0 0
        %1309 = vmatmul.mubr.bf16.gmra.mxu0 %v1271
        %v1310 = vpop.f32.mrf.mxu0
        %v1311 = vadd.f32 0.0, %v1310
        %v1312 = vpop.f32.mrf.mxu0
        %v1313 = vpop.f32.mrf.mxu0
        %v1314 = vpop.f32.mrf.mxu0
        %1315 = vdwg.mxu0
        %v1317 = vsel %vm990, %v1221, 0
        %v1320 = vsel %vm1226, %v988, 0
        %1322 = vmatprep.subr.bf16.mxu0 0
        %1323 = vmatpush1.bf16.msra.mxu0 0
        %1324 = vmatprep.subr.bf16.mxu0 0
        %1325 = vmatpush1.bf16.msra.mxu0 0
        %1326 = vmatprep.subr.bf16.mxu0 0
        %1327 = vmatpush1.bf16.msra.mxu0 0
        %1328 = vmatprep.subr.bf16.mxu0 0
        %1329 = vmatpush1.bf16.msra.mxu0 0
        %1330 = vmatprep.subr.bf16.mxu0 0
        %1331 = vmatpush1.bf16.msra.mxu0 0
        %1332 = vmatprep.subr.bf16.mxu0 0
        %1333 = vmatpush1.bf16.msra.mxu0 0
        %1334 = vmatprep.subr.bf16.mxu0 0
        %1335 = vmatpush1.bf16.msra.mxu0 0
        %1336 = vmatprep.subr.bf16.mxu0 0
        %1337 = vmatpush1.bf16.msra.mxu0 %v1320
        %1338 = vmatprep.subr.bf16.mxu0 0
        %1339 = vmatpush2.bf16.msra.mxu0 0
        %1340 = vmatprep.subr.bf16.mxu0 0
        %1341 = vmatpush2.bf16.msra.mxu0 0
        %1342 = vmatprep.subr.bf16.mxu0 0
        %1343 = vmatpush2.bf16.msra.mxu0 0
        %1344 = vmatprep.subr.bf16.mxu0 0
        %1345 = vmatpush2.bf16.msra.mxu0 0
        %1346 = vmatprep.subr.bf16.mxu0 0
        %1347 = vmatpush2.bf16.msra.mxu0 0
        %1348 = vmatprep.subr.bf16.mxu0 0
        %1349 = vmatpush2.bf16.msra.mxu0 0
        %1350 = vmatprep.subr.bf16.mxu0 0
        %1351 = vmatpush2.bf16.msra.mxu0 0
        %1352 = vmatprep.subr.bf16.mxu0 0
        %1353 = vmatpush2.bf16.msra.mxu0 0
        %1354 = vmatprep.mubr.bf16.mxu0 0
        %1355 = vmatmul.mubr.bf16.gmra.mxu0 %v1317
        %v1356 = vpop.f32.mrf.mxu0
        %v1357 = vadd.f32 0.0, %v1356
        %v1358 = vpop.f32.mrf.mxu0
        %v1359 = vpop.f32.mrf.mxu0
        %v1360 = vpop.f32.mrf.mxu0
        %1361 = vdwg.mxu0
        %v1363 = vsel %vm990, %v1222, 0
        %v1366 = vsel %vm1226, %v989, 0
        %1368 = vmatprep.subr.bf16.mxu0 0
        %1369 = vmatpush1.bf16.msra.mxu0 0
        %1370 = vmatprep.subr.bf16.mxu0 0
        %1371 = vmatpush1.bf16.msra.mxu0 0
        %1372 = vmatprep.subr.bf16.mxu0 0
        %1373 = vmatpush1.bf16.msra.mxu0 0
        %1374 = vmatprep.subr.bf16.mxu0 0
        %1375 = vmatpush1.bf16.msra.mxu0 0
        %1376 = vmatprep.subr.bf16.mxu0 0
        %1377 = vmatpush1.bf16.msra.mxu0 0
        %1378 = vmatprep.subr.bf16.mxu0 0
        %1379 = vmatpush1.bf16.msra.mxu0 0
        %1380 = vmatprep.subr.bf16.mxu0 0
        %1381 = vmatpush1.bf16.msra.mxu0 0
        %1382 = vmatprep.subr.bf16.mxu0 0
        %1383 = vmatpush1.bf16.msra.mxu0 %v1366
        %1384 = vmatprep.subr.bf16.mxu0 0
        %1385 = vmatpush2.bf16.msra.mxu0 0
        %1386 = vmatprep.subr.bf16.mxu0 0
        %1387 = vmatpush2.bf16.msra.mxu0 0
        %1388 = vmatprep.subr.bf16.mxu0 0
        %1389 = vmatpush2.bf16.msra.mxu0 0
        %1390 = vmatprep.subr.bf16.mxu0 0
        %1391 = vmatpush2.bf16.msra.mxu0 0
        %1392 = vmatprep.subr.bf16.mxu0 0
        %1393 = vmatpush2.bf16.msra.mxu0 0
        %1394 = vmatprep.subr.bf16.mxu0 0
        %1395 = vmatpush2.bf16.msra.mxu0 0
        %1396 = vmatprep.subr.bf16.mxu0 0
        %1397 = vmatpush2.bf16.msra.mxu0 0
        %1398 = vmatprep.subr.bf16.mxu0 0
        %1399 = vmatpush2.bf16.msra.mxu0 0
        %1400 = vmatprep.mubr.bf16.mxu0 0
        %1401 = vmatmul.mubr.bf16.gmra.mxu0 %v1363
        %v1402 = vpop.f32.mrf.mxu0
        %v1403 = vadd.f32 0.0, %v1402
        %v1404 = vpop.f32.mrf.mxu0
        %v1405 = vpop.f32.mrf.mxu0
        %v1406 = vpop.f32.mrf.mxu0
        %1407 = vdwg.mxu0
        %v1408 = vcombine.low %v1265, %v1357
        %v1409 = vcombine.high %v1265, %v1357
        %v1411 = vunpack.c.l.s4 1983009808
        %v1412 = vunpack.c.0.s8 %v1411
        %v1413 = vlaneseq
        %v1414 = vshrl.u32 %v1413, 7
        %v1415 = vsub.s32 %v1412, %v1414
        %v1416 = vrot.slane %v1408, %v1415
        %v1418 = vunpack.c.l.s4 1983009808
        %v1419 = vunpack.c.0.s8 %v1418
        %v1420 = vlaneseq
        %v1421 = vshrl.u32 %v1420, 7
        %v1422 = vsub.s32 %v1419, %v1421
        %v1423 = vrot.slane %v1409, %v1422
        %v1424 = vcombine.low %v1311, %v1403
        %v1425 = vcombine.high %v1311, %v1403
        %v1427 = vunpack.c.l.s4 1983009808
        %v1428 = vunpack.c.0.s8 %v1427
        %v1429 = vlaneseq
        %v1430 = vshrl.u32 %v1429, 7
        %v1431 = vsub.s32 %v1428, %v1430
        %v1432 = vrot.slane %v1424, %v1431
        %v1434 = vunpack.c.l.s4 1983009808
        %v1435 = vunpack.c.0.s8 %v1434
        %v1436 = vlaneseq
        %v1437 = vshrl.u32 %v1436, 7
        %v1438 = vsub.s32 %v1435, %v1437
        %v1439 = vrot.slane %v1425, %v1438
        %v1440 = vcombine.low %v1416, %v1432
        %v1441 = vcombine.high %v1416, %v1432
        %v1443 = vunpack.c.l.s4 1934713408
        %v1444 = vunpack.c.0.s8 %v1443
        %v1445 = vlaneseq
        %v1446 = vshrl.u32 %v1445, 7
        %v1447 = vsub.s32 %v1444, %v1446
        %v1448 = vrot.slane %v1440, %v1447
        %v1450 = vunpack.c.l.s4 1934713408
        %v1451 = vunpack.c.0.s8 %v1450
        %v1452 = vlaneseq
        %v1453 = vshrl.u32 %v1452, 7
        %v1454 = vsub.s32 %v1451, %v1453
        %v1455 = vrot.slane %v1441, %v1454
        %v1456 = vcombine.low %v1423, %v1439
        %v1457 = vcombine.high %v1423, %v1439
        %v1459 = vunpack.c.l.s4 1934713408
        %v1460 = vunpack.c.0.s8 %v1459
        %v1461 = vlaneseq
        %v1462 = vshrl.u32 %v1461, 7
        %v1463 = vsub.s32 %v1460, %v1462
        %v1464 = vrot.slane %v1456, %v1463
        %v1466 = vunpack.c.l.s4 1934713408
        %v1467 = vunpack.c.0.s8 %v1466
        %v1468 = vlaneseq
        %v1469 = vshrl.u32 %v1468, 7
        %v1470 = vsub.s32 %v1467, %v1469
        %v1471 = vrot.slane %v1457, %v1470
        %v1472 = vcombine.high %v1448, 0.0
        %v1473 = vcombine.high %v1455, 0.0
        %v1474 = vcombine.high %v1464, 0.0
        %v1475 = vcombine.high %v1471, 0.0
        %v1476 = vcombine.low %v1448, %v1455
        %v1478 = vunpack.c.l.s4 1983009808
        %v1479 = vunpack.c.0.s8 %v1478
        %v1480 = vlaneseq
        %v1481 = vshrl.u32 %v1480, 7
        %v1482 = vsub.s32 %v1479, %v1481
        %v1483 = vrot.slane %v1476, %v1482
        %v1484 = vcombine.low %v1472, %v1473
        %v1486 = vunpack.c.l.s4 1983009808
        %v1487 = vunpack.c.0.s8 %v1486
        %v1488 = vlaneseq
        %v1489 = vshrl.u32 %v1488, 7
        %v1490 = vsub.s32 %v1487, %v1489
        %v1491 = vrot.slane %v1484, %v1490
        %v1492 = vcombine.low %v1464, %v1471
        %v1494 = vunpack.c.l.s4 1983009808
        %v1495 = vunpack.c.0.s8 %v1494
        %v1496 = vlaneseq
        %v1497 = vshrl.u32 %v1496, 7
        %v1498 = vsub.s32 %v1495, %v1497
        %v1499 = vrot.slane %v1492, %v1498
        %v1500 = vcombine.low %v1474, %v1475
        %v1502 = vunpack.c.l.s4 1983009808
        %v1503 = vunpack.c.0.s8 %v1502
        %v1504 = vlaneseq
        %v1505 = vshrl.u32 %v1504, 7
        %v1506 = vsub.s32 %v1503, %v1505
        %v1507 = vrot.slane %v1500, %v1506
        %v1508 = vcombine.low %v1483, %v1491
        %v1509 = vcombine.high %v1483, %v1491
        %v1511 = vunpack.c.l.s4 1934713408
        %v1512 = vunpack.c.0.s8 %v1511
        %v1513 = vlaneseq
        %v1514 = vshrl.u32 %v1513, 7
        %v1515 = vsub.s32 %v1512, %v1514
        %v1516 = vrot.slane %v1508, %v1515
        %v1518 = vunpack.c.l.s4 1934713408
        %v1519 = vunpack.c.0.s8 %v1518
        %v1520 = vlaneseq
        %v1521 = vshrl.u32 %v1520, 7
        %v1522 = vsub.s32 %v1519, %v1521
        %v1523 = vrot.slane %v1509, %v1522
        %v1524 = vcombine.low %v1499, %v1507
        %v1525 = vcombine.high %v1499, %v1507
        %v1527 = vunpack.c.l.s4 1934713408
        %v1528 = vunpack.c.0.s8 %v1527
        %v1529 = vlaneseq
        %v1530 = vshrl.u32 %v1529, 7
        %v1531 = vsub.s32 %v1528, %v1530
        %v1532 = vrot.slane %v1524, %v1531
        %v1534 = vunpack.c.l.s4 1934713408
        %v1535 = vunpack.c.0.s8 %v1534
        %v1536 = vlaneseq
        %v1537 = vshrl.u32 %v1536, 7
        %v1538 = vsub.s32 %v1535, %v1537
        %v1539 = vrot.slane %v1525, %v1538
        %v1540 = vcombine.low %v1516, %v1532
        %v1541 = vcombine.high %v1516, %v1532
        %v1542 = vcombine.low %v1523, %v1539
        %v1543 = vcombine.high %v1523, %v1539
        %1545 = vrot.lane.b32.xlu0 %v1541, 8
        %v1546 = vpop.permute.xlu0 %1545
        %1549 = vrot.lane.b32.xlu0 %v1542, 16
        %v1550 = vpop.permute.xlu0 %1549
        %1553 = vrot.lane.b32.xlu0 %v1543, 24
        %v1554 = vpop.permute.xlu0 %1553
        %v1556 = vsel %vm990, %v1540, %v1546
        %vm1557 = vcmask 130048
        %v1558 = vsel %vm1557, %v1556, %v1550
        %vm1559 = vcmask 195584
        %v1560 = vsel %vm1559, %v1558, %v1554
        %v1561 = vpack.c.bf16 %v1560, %v1560
        %v1562 = vld [vmem:[%s3] sm:$0xf]
        %v1563 = vld [vmem:[%s3 + $0x4] sm:$0xf]
        %v1564 = vld [vmem:[%s3 + $0x8] sm:$0xf]
        %v1565 = vld [vmem:[%s3 + $0xc] sm:$0xf]
        %v1566 = vld [vmem:[%s4] sm:$0x1]
        %v1568 = vlaneseq
        %v1569 = vshrl.u32 %v1568, 7
        %v1570 = vsub.s32 0, %v1569
        %v1571 = vrot.slane %v1566, %v1570
        %v1577 = vunpack.c.l.b16 %v1562
        %v1578 = vunpack.c.l.b16 %v1563
        %v1579 = vunpack.c.l.b16 %v1564
        %v1580 = vunpack.c.l.b16 %v1565
        %v1581 = vpack.c.b16 %v1578, %v1577
        %v1582 = vpack.c.b16 %v1580, %v1579
        %v1586 = vsel %vm440, %v1561, 0
        %1588 = vmatprep.subr.bf16.mxu0 0
        %1589 = vmatpush1.bf16.msra.mxu0 0
        %1590 = vmatprep.subr.bf16.mxu0 0
        %1591 = vmatpush1.bf16.msra.mxu0 0
        %1592 = vmatprep.subr.bf16.mxu0 0
        %1593 = vmatpush1.bf16.msra.mxu0 0
        %1594 = vmatprep.subr.bf16.mxu0 0
        %1595 = vmatpush1.bf16.msra.mxu0 0
        %1596 = vmatprep.subr.bf16.mxu0 0
        %1597 = vmatpush1.bf16.msra.mxu0 0
        %1598 = vmatprep.subr.bf16.mxu0 0
        %1599 = vmatpush1.bf16.msra.mxu0 0
        %1600 = vmatprep.subr.bf16.mxu0 0
        %1601 = vmatpush1.bf16.msra.mxu0 %v1582
        %1602 = vmatprep.subr.bf16.mxu0 0
        %1603 = vmatpush1.bf16.msra.mxu0 %v1581
        %1604 = vmatprep.subr.bf16.mxu0 0
        %1605 = vmatpush2.bf16.msra.mxu0 0
        %1606 = vmatprep.subr.bf16.mxu0 0
        %1607 = vmatpush2.bf16.msra.mxu0 0
        %1608 = vmatprep.subr.bf16.mxu0 0
        %1609 = vmatpush2.bf16.msra.mxu0 0
        %1610 = vmatprep.subr.bf16.mxu0 0
        %1611 = vmatpush2.bf16.msra.mxu0 0
        %1612 = vmatprep.subr.bf16.mxu0 0
        %1613 = vmatpush2.bf16.msra.mxu0 0
        %1614 = vmatprep.subr.bf16.mxu0 0
        %1615 = vmatpush2.bf16.msra.mxu0 0
        %1616 = vmatprep.subr.bf16.mxu0 0
        %1617 = vmatpush2.bf16.msra.mxu0 0
        %1618 = vmatprep.subr.bf16.mxu0 0
        %1619 = vmatpush2.bf16.msra.mxu0 0
        %1620 = vmatprep.mubr.bf16.mxu0 0
        %1621 = vmatmul.mubr.bf16.gmra.mxu0 %v1586
        %v1622 = vpop.f32.mrf.mxu0
        %v1623 = vadd.f32 %v1571, %v1622
        %v1624 = vpop.f32.mrf.mxu0
        %v1625 = vpop.f32.mrf.mxu0
        %v1626 = vpop.f32.mrf.mxu0
        %1627 = vdwg.mxu0
        %v1628 = vadd.f32 %v437, %v1623
        %v1629 = vld [vmem:[%s7] sm:$0x1]
        %v1630 = vld [vmem:[%s8] sm:$0x1]
        %v1631 = vsel %vm440, %v1628, 0.0
        %1632 = vadd.xlane.f32.xlu0 %v1631
        %v1633 = vpop.xlane.xlu0 %1632
        %v1634 = vmul.f32 %v1633, %v444
        %v1635 = vsub.f32 %v1628, %v1634
        %v1636 = vmul.f32 %v1635, %v1635
        %v1637 = vsel %vm440, %v1636, 0.0
        %1638 = vadd.xlane.f32.xlu0 %v1637
        %v1639 = vpop.xlane.xlu0 %1638
        %v1640 = vmul.f32 %v1639, %v444
        %v1641 = vadd.f32 %v1640, 1e-05
        %v1642 = vrsqrt.pop %v1641
        %v1643 = vmul.f32 %v1635, %v1642
        %v1645 = vlaneseq
        %v1646 = vshrl.u32 %v1645, 7
        %v1647 = vsub.s32 0, %v1646
        %v1648 = vrot.slane %v1629, %v1647
        %v1650 = vmul.f32 %v1643, %v1648
        %v1652 = vlaneseq
        %v1653 = vshrl.u32 %v1652, 7
        %v1654 = vsub.s32 0, %v1653
        %v1655 = vrot.slane %v1630, %v1654
        %v1657 = vadd.f32 %v1650, %v1655
        %v1658 = vpack.c.bf16 %v1657, %v1657
        %v1659 = vld [vmem:[%s9] sm:$0xf]
        %v1660 = vld [vmem:[%s9 + $0x4] sm:$0xf]
        %v1661 = vld [vmem:[%s9 + $0x8] sm:$0xf]
        %v1662 = vld [vmem:[%s9 + $0xc] sm:$0xf]
        %v1663 = vld [vmem:[%s10] sm:$0x1]
        %v1665 = vlaneseq
        %v1666 = vshrl.u32 %v1665, 7
        %v1667 = vsub.s32 0, %v1666
        %v1668 = vrot.slane %v1663, %v1667
        %v1674 = vunpack.c.l.b16 %v1659
        %v1675 = vunpack.c.l.b16 %v1660
        %v1676 = vunpack.c.l.b16 %v1661
        %v1677 = vunpack.c.l.b16 %v1662
        %v1678 = vpack.c.b16 %v1675, %v1674
        %v1679 = vpack.c.b16 %v1677, %v1676
        %v1683 = vsel %vm440, %v1658, 0
        %1685 = vmatprep.subr.bf16.mxu0 0
        %1686 = vmatpush1.bf16.msra.mxu0 0
        %1687 = vmatprep.subr.bf16.mxu0 0
        %1688 = vmatpush1.bf16.msra.mxu0 0
        %1689 = vmatprep.subr.bf16.mxu0 0
        %1690 = vmatpush1.bf16.msra.mxu0 0
        %1691 = vmatprep.subr.bf16.mxu0 0
        %1692 = vmatpush1.bf16.msra.mxu0 0
        %1693 = vmatprep.subr.bf16.mxu0 0
        %1694 = vmatpush1.bf16.msra.mxu0 0
        %1695 = vmatprep.subr.bf16.mxu0 0
        %1696 = vmatpush1.bf16.msra.mxu0 0
        %1697 = vmatprep.subr.bf16.mxu0 0
        %1698 = vmatpush1.bf16.msra.mxu0 %v1679
        %1699 = vmatprep.subr.bf16.mxu0 0
        %1700 = vmatpush1.bf16.msra.mxu0 %v1678
        %1701 = vmatprep.subr.bf16.mxu0 0
        %1702 = vmatpush2.bf16.msra.mxu0 0
        %1703 = vmatprep.subr.bf16.mxu0 0
        %1704 = vmatpush2.bf16.msra.mxu0 0
        %1705 = vmatprep.subr.bf16.mxu0 0
        %1706 = vmatpush2.bf16.msra.mxu0 0
        %1707 = vmatprep.subr.bf16.mxu0 0
        %1708 = vmatpush2.bf16.msra.mxu0 0
        %1709 = vmatprep.subr.bf16.mxu0 0
        %1710 = vmatpush2.bf16.msra.mxu0 0
        %1711 = vmatprep.subr.bf16.mxu0 0
        %1712 = vmatpush2.bf16.msra.mxu0 0
        %1713 = vmatprep.subr.bf16.mxu0 0
        %1714 = vmatpush2.bf16.msra.mxu0 0
        %1715 = vmatprep.subr.bf16.mxu0 0
        %1716 = vmatpush2.bf16.msra.mxu0 0
        %1717 = vmatprep.mubr.bf16.mxu0 0
        %1718 = vmatmul.mubr.bf16.gmra.mxu0 %v1683
        %v1719 = vpop.f32.mrf.mxu0
        %v1720 = vadd.f32 %v1668, %v1719
        %v1721 = vpop.f32.mrf.mxu0
        %v1722 = vpop.f32.mrf.mxu0
        %v1723 = vpop.f32.mrf.mxu0
        %1724 = vdwg.mxu0
        %v1725 = vmul.f32 %v1720, 1.702
        %v1726 = vxor.u32 %v1725, 2147483648
        %v1727 = vmul.f32 %v1726, 1.442695
        %v1728 = vpow.pop %v1727
        %v1729 = vadd.f32 %v1728, 1.0
        %v1730 = vrcp.pop %v1729
        %v1731 = vmul.f32 1.0, %v1730
        %v1732 = vmul.f32 %v1720, %v1731
        %v1733 = vpack.c.bf16 %v1732, %v1732
        %v1734 = vld [vmem:[%s11] sm:$0xf]
        %v1735 = vld [vmem:[%s11 + $0x4] sm:$0xf]
        %v1736 = vld [vmem:[%s11 + $0x8] sm:$0xf]
        %v1737 = vld [vmem:[%s11 + $0xc] sm:$0xf]
        %v1738 = vld [vmem:[%s11 + $0x10] sm:$0xf]
        %v1739 = vld [vmem:[%s11 + $0x14] sm:$0xf]
        %v1740 = vld [vmem:[%s11 + $0x18] sm:$0xf]
        %v1741 = vld [vmem:[%s11 + $0x1c] sm:$0xf]
        %v1742 = vld [vmem:[%s11 + $0x20] sm:$0xf]
        %v1743 = vld [vmem:[%s11 + $0x24] sm:$0xf]
        %v1744 = vld [vmem:[%s11 + $0x28] sm:$0xf]
        %v1745 = vld [vmem:[%s11 + $0x2c] sm:$0xf]
        %v1746 = vld [vmem:[%s11 + $0x30] sm:$0xf]
        %v1747 = vld [vmem:[%s11 + $0x34] sm:$0xf]
        %v1748 = vld [vmem:[%s11 + $0x38] sm:$0xf]
        %v1749 = vld [vmem:[%s11 + $0x3c] sm:$0xf]
        %v1750 = vld [vmem:[%s12] sm:$0x1]
        %v1752 = vlaneseq
        %v1753 = vshrl.u32 %v1752, 7
        %v1754 = vsub.s32 0, %v1753
        %v1755 = vrot.slane %v1750, %v1754
        %v1773 = vunpack.c.l.b16 %v1734
        %v1774 = vunpack.c.l.b16 %v1735
        %v1775 = vunpack.c.l.b16 %v1736
        %v1776 = vunpack.c.l.b16 %v1737
        %v1777 = vunpack.c.l.b16 %v1738
        %v1778 = vunpack.c.l.b16 %v1739
        %v1779 = vunpack.c.l.b16 %v1740
        %v1780 = vunpack.c.l.b16 %v1741
        %v1781 = vunpack.c.l.b16 %v1742
        %v1782 = vunpack.c.l.b16 %v1743
        %v1783 = vunpack.c.l.b16 %v1744
        %v1784 = vunpack.c.l.b16 %v1745
        %v1785 = vunpack.c.l.b16 %v1746
        %v1786 = vunpack.c.l.b16 %v1747
        %v1787 = vunpack.c.l.b16 %v1748
        %v1788 = vunpack.c.l.b16 %v1749
        %v1789 = vpack.c.b16 %v1774, %v1773
        %v1790 = vpack.c.b16 %v1776, %v1775
        %v1791 = vpack.c.b16 %v1778, %v1777
        %v1792 = vpack.c.b16 %v1780, %v1779
        %v1793 = vpack.c.b16 %v1782, %v1781
        %v1794 = vpack.c.b16 %v1784, %v1783
        %v1795 = vpack.c.b16 %v1786, %v1785
        %v1796 = vpack.c.b16 %v1788, %v1787
        %1805 = vmatprep.subr.bf16.mxu0 0
        %1806 = vmatpush1.bf16.msra.mxu0 %v1796
        %1807 = vmatprep.subr.bf16.mxu0 0
        %1808 = vmatpush1.bf16.msra.mxu0 %v1795
        %1809 = vmatprep.subr.bf16.mxu0 0
        %1810 = vmatpush1.bf16.msra.mxu0 %v1794
        %1811 = vmatprep.subr.bf16.mxu0 0
        %1812 = vmatpush1.bf16.msra.mxu0 %v1793
        %1813 = vmatprep.subr.bf16.mxu0 0
        %1814 = vmatpush1.bf16.msra.mxu0 %v1792
        %1815 = vmatprep.subr.bf16.mxu0 0
        %1816 = vmatpush1.bf16.msra.mxu0 %v1791
        %1817 = vmatprep.subr.bf16.mxu0 0
        %1818 = vmatpush1.bf16.msra.mxu0 %v1790
        %1819 = vmatprep.subr.bf16.mxu0 0
        %1820 = vmatpush1.bf16.msra.mxu0 %v1789
        %1821 = vmatprep.subr.bf16.mxu0 0
        %1822 = vmatpush2.bf16.msra.mxu0 0
        %1823 = vmatprep.subr.bf16.mxu0 0
        %1824 = vmatpush2.bf16.msra.mxu0 0
        %1825 = vmatprep.subr.bf16.mxu0 0
        %1826 = vmatpush2.bf16.msra.mxu0 0
        %1827 = vmatprep.subr.bf16.mxu0 0
        %1828 = vmatpush2.bf16.msra.mxu0 0
        %1829 = vmatprep.subr.bf16.mxu0 0
        %1830 = vmatpush2.bf16.msra.mxu0 0
        %1831 = vmatprep.subr.bf16.mxu0 0
        %1832 = vmatpush2.bf16.msra.mxu0 0
        %1833 = vmatprep.subr.bf16.mxu0 0
        %1834 = vmatpush2.bf16.msra.mxu0 0
        %1835 = vmatprep.subr.bf16.mxu0 0
        %1836 = vmatpush2.bf16.msra.mxu0 0
        %1837 = vmatprep.mubr.bf16.mxu0 0
        %1838 = vmatmul.mubr.bf16.gmra.mxu0 %v1733
        %v1839 = vpop.f32.mrf.mxu0
        %v1840 = vadd.f32 %v1755, %v1839
        %v1841 = vpop.f32.mrf.mxu0
        %v1842 = vpop.f32.mrf.mxu0
        %v1843 = vpop.f32.mrf.mxu0
        %1844 = vdwg.mxu0
        %v1845 = vadd.f32 %v1628, %v1840
        %1846 = vst.msk [vmem:[%s431] sm:$0xff] %vm440, %v1845
        %s1847 = sand.u32 %s313, 1
        %s1848 = scalar_lea.sflag [#allocation3], %s1847
        %s1849 = sand.u32 %s313, 1
        %s1850 = smul.addr %s1849, 8
        %s1851 = scalar_lea.vmem [#allocation2], %s1850
        // Predicated region
        $region73: #{tpu_custom_call.1} parent=71 // pred_check
          %p1852 = pneg %p323
        $region74: #{tpu_custom_call.1} parent=71 // pred_check_branch
          %1854 = sbr.rel (%p1852) target = $region76
        $region75: #{tpu_custom_call.1} parent=71 // pred_region
          %s1856 = ssub.s32 128, 128
          %1857 = vsyncadd %s1848, %s1856
          %s1858 = smul.addr %s27, 128
          %s1859 = scalar_lea.hbm %s13, %s1858
          %s1861 = sshll.u32 %s1851, 4
          %s1862 = int_to_ptr.vmem [resolvable:$true] %s1861
          %1864 = dma.vmem_to_hbm [thread:$0]  %s1862, 128, %s1859, %s1848
        $region76: #{tpu_custom_call.1} parent=71 // pred_fallthru
          _
      $region72: #{tpu_custom_call.1} parent=5 // pred_fallthru
        _
      %p1865 = scmp.le.s32.totalorder 2, %s22
      // Predicated region
      $region77: #{tpu_custom_call.1} parent=5 // pred_check
        %p1866 = pneg %p1865
      $region78: #{tpu_custom_call.1} parent=5 // pred_check_branch
        %1868 = sbr.rel (%p1866) target = $region80
      $region79: #{tpu_custom_call.1} parent=5 // pred_region
        %s1869 = ssub.s32 %s22, 2
        // Predicated region
        $region81: #{tpu_custom_call.1} parent=79 // pred_check
          %p1870 = pneg %p329
        $region82: #{tpu_custom_call.1} parent=79 // pred_check_branch
          %1872 = sbr.rel (%p1870) target = $region84
        $region83: #{tpu_custom_call.1} parent=79 // pred_region
          %s1873 = sand.u32 %s314, 1
          %s1874 = scalar_lea.sflag [#allocation3], %s1873
          %s1875 = sand.u32 %s314, 1
          %s1876 = smul.addr %s1875, 8
          %s1877 = scalar_lea.vmem [#allocation2], %s1876
          %1878 = dma.done %s1874, 128
        $region84: #{tpu_custom_call.1} parent=79 // pred_fallthru
          _
      $region80: #{tpu_custom_call.1} parent=5 // pred_fallthru
        _
    $region6: #{tpu_custom_call.1} parent=1 // loop_footer
      %s26 = sadd.s32 1, %s22
    $region7: #{tpu_custom_call.1} parent=1 // loop_footer_branch
      %21 = sbr.rel target = $region3
    $region8: #{tpu_custom_call.1} parent=1 // loop_exit
      _
    %1879 = vsyncpa [#allocation3], 1
    %s1880 = scalar_lea.sflag [#allocation3], 1
    %1881 = vsyncpa %s1880, 1

</llo_original>
